<compile_context>
chip_gen: v6e
topology: v6e:2x2x1
jax: 0.10.0
libtpu: 0.0.40
codegen_flags: <defaults>
</compile_context>

<pallas_src>
import jax
import jax.numpy as jnp
from jax.experimental import pallas as pl
from jax.experimental.pallas import tpu as pltpu


H1, H2 = 400, 300          # logical hidden sizes (PyTorch module)
H1_PAD, H2_PAD = 512, 384  # lane-aligned padded hidden sizes (do NOT round 384 up to
                           # 512: same number of MXU passes, only extra VMEM/DMA bytes)
LANE = 128


def _round_up(x, m):
    return (x + m - 1) // m * m


def _potential_kernel(x_ref, w1_ref, b1_ref, w2_ref, b2_ref, w3_ref, b3_ref, o_ref):
    # x: (tb, S) f32 -> bf16 for the MXU; accumulate in f32.
    x = x_ref[...].astype(jnp.bfloat16)

    h1 = jnp.dot(x, w1_ref[...], preferred_element_type=jnp.float32) + b1_ref[...]
    h1 = jnp.maximum(h1, 0.0)                                           # (tb, 512); pad cols == 0

    h2 = jnp.dot(h1.astype(jnp.bfloat16), w2_ref[...],
                 preferred_element_type=jnp.float32) + b2_ref[...]
    h2 = jnp.maximum(h2, 0.0)                                           # (tb, 384); pad cols == 0

    # Final 300 -> 1 projection stays off the MXU (an N=1 matmul wastes a full pass):
    # VPU multiply by the zero-padded (1, 384) w3 row, fold the three 128-lane chunks
    # with VPU adds, then one aligned (tb,128)->(128,tb) XLU transpose + sublane
    # reduce so the per-row scalars land lane-dense in a (1, tb) row
    # (unmasked stores, dense output DMA).
    p = h2 * w3_ref[...]                                                # (tb, 384) f32
    s = p[:, 0:LANE] + p[:, LANE:2 * LANE] + p[:, 2 * LANE:3 * LANE]    # (tb, 128) f32
    q = jnp.sum(s.T, axis=0, keepdims=True) + b3_ref[0, 0]              # (1, tb)  f32
    o_ref[...] = q.astype(o_ref.dtype)


def prepare_params(params):
    """One-time weight prep: pad to lane-aligned widths, cast matmul weights to bf16.

    Call once and reuse the result across forwards; re-padding/re-casting ~1 MB of
    weights per call costs more than the kernel itself at small/medium batch.
    """
    w1 = jnp.pad(params["w1"], ((0, 0), (0, H1_PAD - H1))).astype(jnp.bfloat16)           # (S, 512)
    b1 = jnp.pad(params["b1"].reshape(1, H1), ((0, 0), (0, H1_PAD - H1)))                  # (1, 512) f32
    w2 = jnp.pad(params["w2"], ((0, H1_PAD - H1), (0, H2_PAD - H2))).astype(jnp.bfloat16)  # (512, 384)
    b2 = jnp.pad(params["b2"].reshape(1, H2), ((0, 0), (0, H2_PAD - H2)))                  # (1, 384) f32
    w3 = jnp.pad(params["w3"].reshape(1, H2), ((0, 0), (0, H2_PAD - H2)))                  # (1, 384) f32 row
    b3 = params["b3"].reshape(1, 1)                                                        # (1, 1)   f32
    return {"w1": w1, "b1": b1, "w2": w2, "b2": b2, "w3": w3, "b3": b3}


def _choose_tiling(B, tile_b_max):
    """Bucketed (padded_batch, batch_tile).

    - the tile is a power of two >= 128 so blocks stay lane-aligned and divide b_pad;
    - small/medium B pads to the next power of two (one Mosaic compile per bucket,
      not one per distinct B); large B pads to a multiple of the tile;
    - when one grid step would cover the whole batch we still split into >= 2 blocks
      so the "parallel" axis can shard across both TensorCores on v7x.
    """
    tile_b_max = max(LANE, int(tile_b_max))
    tile_b_max = 1 << (tile_b_max.bit_length() - 1)     # round down to a power of two
    if B <= 2 * tile_b_max:
        b_pad = max(LANE, pl.next_power_of_2(int(B)))
        tb = min(tile_b_max, b_pad)
        if tb == b_pad and b_pad >= 2 * LANE:
            tb = b_pad // 2                             # guarantee >= 2 grid steps
    else:
        b_pad = _round_up(B, tile_b_max)
        tb = tile_b_max
    return b_pad, tb


def potential_forward(state, prep, *, tile_b=1024):
    """state: (B, state_dim) f32. prep: prepare_params(...) output. Returns (B, 1) f32."""
    B, S = state.shape
    b_pad, tb = _choose_tiling(B, tile_b)
    n_blocks = b_pad // tb

    x = state if b_pad == B else jnp.pad(state, ((0, b_pad - B), (0, 0)))

    w1, b1, w2, b2, w3, b3 = (prep[k] for k in ("w1", "b1", "w2", "b2", "w3", "b3"))

    const = lambda shape: pl.BlockSpec(shape, lambda i: (0, 0))   # VMEM-resident operand

    cp_kwargs = dict(dimension_semantics=("parallel",))
    if tb >= 2048:
        # v5e's scoped-VMEM default is only 16 MiB; very large tiles need headroom.
        cp_kwargs["vmem_limit_bytes"] = 32 * 1024 * 1024

    flops = 2 * b_pad * (S * H1_PAD + H1_PAD * H2_PAD + H2_PAD)
    bytes_accessed = (4 * b_pad * S + 4 * b_pad
                      + 2 * (S * H1_PAD + H1_PAD * H2_PAD)
                      + 4 * (H1_PAD + 2 * H2_PAD + 1))

    out_row = pl.pallas_call(
        _potential_kernel,
        out_shape=jax.ShapeDtypeStruct((1, b_pad), jnp.float32),       # batch along lanes
        grid=(n_blocks,),
        in_specs=[
            pl.BlockSpec((tb, S), lambda i: (i, 0)),                   # state tile (pipelined)
            const(w1.shape), const(b1.shape),                          # resident weights/biases
            const(w2.shape), const(b2.shape),
            const(w3.shape),
            pl.BlockSpec(memory_space=pltpu.MemorySpace.SMEM),         # (1,1) scalar bias b3
        ],
        out_specs=pl.BlockSpec((1, tb), lambda i: (0, i)),             # lane-dense output row
        compiler_params=pltpu.CompilerParams(**cp_kwargs),
        cost_estimate=pl.CostEstimate(flops=flops, transcendentals=0,
                                      bytes_accessed=bytes_accessed),
    )(x, w1, b1, w2, b2, w3, b3)

    return out_row[0, :B].reshape(B, 1)


def init_params(state_dim, key):
    """Deterministic init mimicking nn.Linear's default U(-1/sqrt(fan_in), +)."""
    def linear(key, fan_in, fan_out):
        kw, kb = jax.random.split(key)
        bound = 1.0 / jnp.sqrt(fan_in)
        w = jax.random.uniform(kw, (fan_in, fan_out), jnp.float32, -bound, bound)
        b = jax.random.uniform(kb, (1, fan_out), jnp.float32, -bound, bound)
        return w, b

    k1, k2, k3 = jax.random.split(key, 3)
    w1, b1 = linear(k1, state_dim, H1)
    w2, b2 = linear(k2, H1, H2)
    w3, b3 = linear(k3, H2, 1)
    return {"w1": w1, "b1": b1, "w2": w2, "b2": b2, "w3": w3, "b3": b3}


def potential_ref_f32(state, p):
    """Full f32 reference (matches the PyTorch module semantics)."""
    h1 = jnp.maximum(state @ p["w1"] + p["b1"], 0.0)
    h2 = jnp.maximum(h1 @ p["w2"] + p["b2"], 0.0)
    return h2 @ p["w3"] + p["b3"]


def potential_ref_bf16(state, p):
    """Precision-matched reference (bf16 matmuls, f32 accumulate)."""
    bf = jnp.bfloat16
    h1 = jnp.dot(state.astype(bf), p["w1"].astype(bf),
                 preferred_element_type=jnp.float32) + p["b1"]
    h1 = jnp.maximum(h1, 0.0)
    h2 = jnp.dot(h1.astype(bf), p["w2"].astype(bf),
                 preferred_element_type=jnp.float32) + p["b2"]
    h2 = jnp.maximum(h2, 0.0)
    return jnp.sum(h2 * p["w3"][:, 0][None, :], axis=-1, keepdims=True) + p["b3"]


if __name__ == "__main__":
    key = jax.random.PRNGKey(0)
    k_params, k_state1, k_state2 = jax.random.split(key, 3)

    STATE_DIM = 8
    raw = init_params(STATE_DIM, k_params)
    prep = prepare_params(raw)      # one-time weight prep, reused across every forward

    # Small batch (B=2): padded to one 128-row tile inside the wrapper.
    state_small = jax.random.normal(k_state1, (2, STATE_DIM), jnp.float32)
    out_small = jax.block_until_ready(potential_forward(state_small, prep))
    assert out_small.shape == (2, 1), out_small.shape
    assert jnp.allclose(out_small, potential_ref_bf16(state_small, raw),
                        atol=1e-4, rtol=1e-4)
    assert jnp.allclose(out_small, potential_ref_f32(state_small, raw),
                        atol=5e-2, rtol=5e-2)

    # Non-multiple batch (B=300) with a small tile cap to exercise multi-block
    # tiling, batch padding, megacore splitting, and the lane-dense output path.
    state_big = jax.random.normal(k_state2, (300, STATE_DIM), jnp.float32)
    out_big = jax.block_until_ready(potential_forward(state_big, prep, tile_b=256))
    assert out_big.shape == (300, 1), out_big.shape
    assert jnp.allclose(out_big, potential_ref_bf16(state_big, raw),
                        atol=1e-4, rtol=1e-4)
    assert jnp.allclose(out_big, potential_ref_f32(state_big, raw),
                        atol=5e-2, rtol=5e-2)

    print("KERNEL_OK")
</pallas_src>

<mosaic_0001>
module attributes {stable_mosaic.version = 11 : i64} {
  func.func @_potential_kernel(%arg0: i32, %arg1: memref<128x8xf32, #tpu.memory_space<vmem>>, %arg2: memref<8x512xbf16, #tpu.memory_space<vmem>>, %arg3: memref<1x512xf32, #tpu.memory_space<vmem>>, %arg4: memref<512x384xbf16, #tpu.memory_space<vmem>>, %arg5: memref<1x384xf32, #tpu.memory_space<vmem>>, %arg6: memref<1x384xf32, #tpu.memory_space<vmem>>, %arg7: memref<1x1xf32, #tpu.memory_space<smem>>, %arg8: memref<1x128xf32, #tpu.memory_space<vmem>>) attributes {dimension_semantics = [#tpu.dimension_semantics<parallel>], iteration_bounds = array<i64: 1>, scalar_prefetch = 0 : i64, scratch_operands = 0 : i64, tpu.core_type = #tpu.core_type<tc>, window_params = [{transform_indices = @transform_0, window_bounds = array<i64: 128, 8>}, {pipeline_mode = #tpu.pipeline_mode<synchronous>, transform_indices = @transform_1, window_bounds = array<i64: 8, 512>}, {pipeline_mode = #tpu.pipeline_mode<synchronous>, transform_indices = @transform_2, window_bounds = array<i64: 1, 512>}, {pipeline_mode = #tpu.pipeline_mode<synchronous>, transform_indices = @transform_3, window_bounds = array<i64: 512, 384>}, {pipeline_mode = #tpu.pipeline_mode<synchronous>, transform_indices = @transform_4, window_bounds = array<i64: 1, 384>}, {pipeline_mode = #tpu.pipeline_mode<synchronous>, transform_indices = @transform_5, window_bounds = array<i64: 1, 384>}, {transform_indices = @transform_6, window_bounds = array<i64: 1, 1>}, {transform_indices = @transform_7, window_bounds = array<i64: 1, 128>}]} {
    %c0 = arith.constant 0 : index
    %c0_0 = arith.constant 0 : index
    %0 = vector.load %arg1[%c0, %c0_0] : memref<128x8xf32, #tpu.memory_space<vmem>>, vector<128x8xf32>
    %1 = arith.truncf %0 : vector<128x8xf32> to vector<128x8xbf16>
    %c0_1 = arith.constant 0 : index
    %c0_2 = arith.constant 0 : index
    %2 = vector.load %arg2[%c0_1, %c0_2] : memref<8x512xbf16, #tpu.memory_space<vmem>>, vector<8x512xbf16>
    %cst = arith.constant dense<0.000000e+00> : vector<128x512xf32>
    %3 = tpu.matmul %1, %2, %cst {dimension_numbers = #tpu.dot_dimension_numbers<[1], [0], [0], [1], [0, 0, 1, 1], [], []>} : vector<128x8xbf16>, vector<8x512xbf16>, vector<128x512xf32> -> vector<128x512xf32>
    %c0_3 = arith.constant 0 : index
    %c0_4 = arith.constant 0 : index
    %4 = vector.load %arg3[%c0_3, %c0_4] : memref<1x512xf32, #tpu.memory_space<vmem>>, vector<1x512xf32>
    %5 = vector.broadcast %4 : vector<1x512xf32> to vector<128x512xf32>
    %6 = arith.addf %3, %5 : vector<128x512xf32>
    %cst_5 = arith.constant 0.000000e+00 : f32
    %7 = vector.broadcast %cst_5 : f32 to vector<128x512xf32>
    %8 = arith.maximumf %6, %7 : vector<128x512xf32>
    %9 = arith.truncf %8 : vector<128x512xf32> to vector<128x512xbf16>
    %c0_6 = arith.constant 0 : index
    %c0_7 = arith.constant 0 : index
    %10 = vector.load %arg4[%c0_6, %c0_7] : memref<512x384xbf16, #tpu.memory_space<vmem>>, vector<512x384xbf16>
    %cst_8 = arith.constant dense<0.000000e+00> : vector<128x384xf32>
    %11 = tpu.matmul %9, %10, %cst_8 {dimension_numbers = #tpu.dot_dimension_numbers<[1], [0], [0], [1], [0, 0, 1, 1], [], []>} : vector<128x512xbf16>, vector<512x384xbf16>, vector<128x384xf32> -> vector<128x384xf32>
    %c0_9 = arith.constant 0 : index
    %c0_10 = arith.constant 0 : index
    %12 = vector.load %arg5[%c0_9, %c0_10] : memref<1x384xf32, #tpu.memory_space<vmem>>, vector<1x384xf32>
    %13 = vector.broadcast %12 : vector<1x384xf32> to vector<128x384xf32>
    %14 = arith.addf %11, %13 : vector<128x384xf32>
    %cst_11 = arith.constant 0.000000e+00 : f32
    %15 = vector.broadcast %cst_11 : f32 to vector<128x384xf32>
    %16 = arith.maximumf %14, %15 : vector<128x384xf32>
    %c0_12 = arith.constant 0 : index
    %c0_13 = arith.constant 0 : index
    %17 = vector.load %arg6[%c0_12, %c0_13] : memref<1x384xf32, #tpu.memory_space<vmem>>, vector<1x384xf32>
    %18 = vector.broadcast %17 : vector<1x384xf32> to vector<128x384xf32>
    %19 = arith.mulf %16, %18 : vector<128x384xf32>
    %20 = vector.extract_strided_slice %19 {offsets = [0, 0], sizes = [128, 128], strides = [1, 1]} : vector<128x384xf32> to vector<128x128xf32>
    %21 = vector.extract_strided_slice %19 {offsets = [0, 128], sizes = [128, 128], strides = [1, 1]} : vector<128x384xf32> to vector<128x128xf32>
    %22 = arith.addf %20, %21 : vector<128x128xf32>
    %23 = vector.extract_strided_slice %19 {offsets = [0, 256], sizes = [128, 128], strides = [1, 1]} : vector<128x384xf32> to vector<128x128xf32>
    %24 = arith.addf %22, %23 : vector<128x128xf32>
    %25 = tpu.transpose %24, [1, 0] : vector<128x128xf32> -> vector<128x128xf32>
    %cst_14 = arith.constant dense<0.000000e+00> : vector<128xf32>
    %26 = vector.multi_reduction <add>, %25, %cst_14 [0] : vector<128x128xf32> to vector<128xf32>
    %27 = vector.shape_cast %26 : vector<128xf32> to vector<1x128xf32>
    %c0_15 = arith.constant 0 : index
    %c0_16 = arith.constant 0 : index
    %28 = memref.load %arg7[%c0_15, %c0_16] : memref<1x1xf32, #tpu.memory_space<smem>>
    %29 = vector.broadcast %28 : f32 to vector<1x128xf32>
    %30 = arith.addf %27, %29 : vector<1x128xf32>
    %c0_17 = arith.constant 0 : index
    %c0_18 = arith.constant 0 : index
    %31 = vector.load %arg8[%c0_17, %c0_18] : memref<1x128xf32, #tpu.memory_space<vmem>>, vector<1x128xf32>
    tpu.vector_store %arg8[%c0_17, %c0_18], %30 {strides = array<i32>} : memref<1x128xf32, #tpu.memory_space<vmem>>, vector<1x128xf32>,
    return
  }
  func.func @transform_0(%arg0: i32) -> (i32, i32) {
    %c0_i32 = arith.constant 0 : i32
    %c0_i32_0 = arith.constant 0 : i32
    return %arg0, %c0_i32 : i32, i32
  }
  func.func @transform_1(%arg0: i32) -> (i32, i32) {
    %c0_i32 = arith.constant 0 : i32
    %c0_i32_0 = arith.constant 0 : i32
    %c0_i32_1 = arith.constant 0 : i32
    return %c0_i32, %c0_i32_0 : i32, i32
  }
  func.func @transform_2(%arg0: i32) -> (i32, i32) {
    %c0_i32 = arith.constant 0 : i32
    %c0_i32_0 = arith.constant 0 : i32
    %c0_i32_1 = arith.constant 0 : i32
    return %c0_i32, %c0_i32_0 : i32, i32
  }
  func.func @transform_3(%arg0: i32) -> (i32, i32) {
    %c0_i32 = arith.constant 0 : i32
    %c0_i32_0 = arith.constant 0 : i32
    %c0_i32_1 = arith.constant 0 : i32
    return %c0_i32, %c0_i32_0 : i32, i32
  }
  func.func @transform_4(%arg0: i32) -> (i32, i32) {
    %c0_i32 = arith.constant 0 : i32
    %c0_i32_0 = arith.constant 0 : i32
    %c0_i32_1 = arith.constant 0 : i32
    return %c0_i32, %c0_i32_0 : i32, i32
  }
  func.func @transform_5(%arg0: i32) -> (i32, i32) {
    %c0_i32 = arith.constant 0 : i32
    %c0_i32_0 = arith.constant 0 : i32
    %c0_i32_1 = arith.constant 0 : i32
    return %c0_i32, %c0_i32_0 : i32, i32
  }
  func.func @transform_6(%arg0: i32) -> (i32, i32) {
    %c0_i32 = arith.constant 0 : i32
    %c0_i32_0 = arith.constant 0 : i32
    %c0_i32_1 = arith.constant 0 : i32
    return %c0_i32, %c0_i32_0 : i32, i32
  }
  func.func @transform_7(%arg0: i32) -> (i32, i32) {
    %c0_i32 = arith.constant 0 : i32
    %c0_i32_0 = arith.constant 0 : i32
    return %c0_i32, %arg0 : i32, i32
  }
}

</mosaic_0001>

<llo_original>
// kernel: tpu_custom_call.1
$region0: #{tpu_custom_call.1}
  #allocation0 [shape = 'u32[]', space=smem, size = 0x4, offset = 0x4, fixed_abs, tag = 'smem constant byte address 0x4 - core index']
  #allocation1 [shape = 'u32[144,128]{1,0:T(1,128)}', space=vmem, size = 0x12000, scoped, tag = 'internal scratch']
  #allocation2 [shape = 'f32[1,1]{1,0:T(1,128)S(6)}', space=smem, size = 0x200, scoped, tag = 'scoped memory for tpu_custom_call.1']
  %s0 = inlined_call_operand.vmem [shape: f32[128,8], index: 0, kind: input, shape index: {}]
  %s1 = inlined_call_operand.vmem [shape: bf16[8,512], index: 1, kind: input, shape index: {}]
  %s2 = inlined_call_operand.vmem [shape: f32[1,512], index: 2, kind: input, shape index: {}]
  %s3 = inlined_call_operand.hbm [shape: bf16[512,384], index: 3, kind: input, shape index: {}]
  %s4 = inlined_call_operand.vmem [shape: f32[1,384], index: 4, kind: input, shape index: {}]
  %s5 = inlined_call_operand.vmem [shape: f32[1,384], index: 5, kind: input, shape index: {}]
  %s6 = inlined_call_operand.<no memory space> [shape: f32[1,1], index: 6, kind: input, shape index: {}]
  %s7 = inlined_call_operand.hbm [shape: f32[1,128], index: 7, kind: output, shape index: {}]
  %s8 = sld [smem:[#allocation0]]
  $region42: #{tpu_custom_call.1} parent=0
    _
  %s10 = ssub.s32 1, %s8
  %s11 = scalar_select 0, %s10, %s8
  %12 = sst [smem:[#allocation2]] %s6
  $region1: #{tpu_custom_call.1} parent=0
    #allocation3 [shape = 'u8[393216]{0}', space=vmem, size = 0x60000, scoped, tag = 'input window, operand 3, single buffered']
    #allocation4 [shape = 's32[1]{0}', space=sflag, size = 0x4, scoped, tag = 'scoped memory for tpu_custom_call.1']
    #allocation5 [shape = 's32[1]{0}', space=sflag, size = 0x4, scoped, tag = 'scoped memory for tpu_custom_call.1']
    #allocation6 [shape = 'u8[512]{0}', space=vmem, size = 0x400, scoped, tag = 'output window, operand 0, single buffered']
    %13 = vsyncpa [#allocation4], 0
    %14 = vsyncpa [#allocation5], 0
    // Predicated region
    $region2: #{tpu_custom_call.1} parent=1 // pred_check
      _
    $region3: #{tpu_custom_call.1} parent=1 // pred_check_branch
      %16 = sbr.rel (0) target = $region5
    $region4: #{tpu_custom_call.1} parent=1 // pred_region
      _
    $region5: #{tpu_custom_call.1} parent=1 // pred_fallthru
      _
    // Predicated region
    $region6: #{tpu_custom_call.1} parent=1 // pred_check
      _
    $region7: #{tpu_custom_call.1} parent=1 // pred_check_branch
      %18 = sbr.rel (0) target = $region9
    $region8: #{tpu_custom_call.1} parent=1 // pred_region
      _
    $region9: #{tpu_custom_call.1} parent=1 // pred_fallthru
      _
    // Predicated region
    $region10: #{tpu_custom_call.1} parent=1 // pred_check
      _
    $region11: #{tpu_custom_call.1} parent=1 // pred_check_branch
      %20 = sbr.rel (0) target = $region13
    $region12: #{tpu_custom_call.1} parent=1 // pred_region
      _
    $region13: #{tpu_custom_call.1} parent=1 // pred_fallthru
      _
    // Predicated region
    $region14: #{tpu_custom_call.1} parent=1 // pred_check
      _
    $region15: #{tpu_custom_call.1} parent=1 // pred_check_branch
      %22 = sbr.rel (0) target = $region17
    $region16: #{tpu_custom_call.1} parent=1 // pred_region
      %s24 = ssub.s32 12288, 12288
      %25 = vsyncadd [#allocation4], %s24
      %s26 = sshll.u32 [#allocation3], 4
      %s27 = int_to_ptr.vmem [resolvable:$true] %s26
      %32 = dma.hbm_to_vmem [thread:$0]  %s3, 12288, %s27, [#allocation4], 192, 192, 12
    $region17: #{tpu_custom_call.1} parent=1 // pred_fallthru
      _
    // Predicated region
    $region18: #{tpu_custom_call.1} parent=1 // pred_check
      _
    $region19: #{tpu_custom_call.1} parent=1 // pred_check_branch
      %34 = sbr.rel (0) target = $region21
    $region20: #{tpu_custom_call.1} parent=1 // pred_region
      _
    $region21: #{tpu_custom_call.1} parent=1 // pred_fallthru
      _
    // Predicated region
    $region22: #{tpu_custom_call.1} parent=1 // pred_check
      _
    $region23: #{tpu_custom_call.1} parent=1 // pred_check_branch
      %36 = sbr.rel (0) target = $region25
    $region24: #{tpu_custom_call.1} parent=1 // pred_region
      _
    $region25: #{tpu_custom_call.1} parent=1 // pred_fallthru
      _
    // Predicated region
    $region26: #{tpu_custom_call.1} parent=1 // pred_check
      _
    $region27: #{tpu_custom_call.1} parent=1 // pred_check_branch
      %38 = sbr.rel (0) target = $region29
    $region28: #{tpu_custom_call.1} parent=1 // pred_region
      _
    $region29: #{tpu_custom_call.1} parent=1 // pred_fallthru
      _
    // Predicated region
    $region30: #{tpu_custom_call.1} parent=1 // pred_check
      _
    $region31: #{tpu_custom_call.1} parent=1 // pred_check_branch
      %40 = sbr.rel (0) target = $region33
    $region32: #{tpu_custom_call.1} parent=1 // pred_region
      %41 = dma.done [#allocation4], 12288
    $region33: #{tpu_custom_call.1} parent=1 // pred_fallthru
      _
    %v43 = vld [vmem:[%s0] sm:$0xff]
    %v44 = vld [vmem:[%s0 + $0x8] sm:$0xff]
    %v45 = vld [vmem:[%s0 + $0x10] sm:$0xff]
    %v46 = vld [vmem:[%s0 + $0x18] sm:$0xff]
    %v47 = vld [vmem:[%s0 + $0x20] sm:$0xff]
    %v48 = vld [vmem:[%s0 + $0x28] sm:$0xff]
    %v49 = vld [vmem:[%s0 + $0x30] sm:$0xff]
    %v50 = vld [vmem:[%s0 + $0x38] sm:$0xff]
    %v51 = vld [vmem:[%s0 + $0x40] sm:$0xff]
    %v52 = vld [vmem:[%s0 + $0x48] sm:$0xff]
    %v53 = vld [vmem:[%s0 + $0x50] sm:$0xff]
    %v54 = vld [vmem:[%s0 + $0x58] sm:$0xff]
    %v55 = vld [vmem:[%s0 + $0x60] sm:$0xff]
    %v56 = vld [vmem:[%s0 + $0x68] sm:$0xff]
    %v57 = vld [vmem:[%s0 + $0x70] sm:$0xff]
    %v58 = vld [vmem:[%s0 + $0x78] sm:$0xff]
    %v59 = vpack.c.bf16 %v44, %v43
    %v60 = vpack.c.bf16 %v46, %v45
    %v61 = vpack.c.bf16 %v48, %v47
    %v62 = vpack.c.bf16 %v50, %v49
    %v63 = vpack.c.bf16 %v52, %v51
    %v64 = vpack.c.bf16 %v54, %v53
    %v65 = vpack.c.bf16 %v56, %v55
    %v66 = vpack.c.bf16 %v58, %v57
    %v67 = vld [vmem:[%s1] sm:$0xff]
    %v68 = vld [vmem:[%s1 + $0x8] sm:$0xff]
    %v69 = vld [vmem:[%s2] sm:$0xf]
    %v71 = vlaneseq
    %v72 = vshrl.u32 %v71, 7
    %v73 = vsub.s32 0, %v72
    %v74 = vrot.slane %v69, %v73
    %v75 = vlaneseq
    %v76 = vshrl.u32 %v75, 7
    %v77 = vsub.s32 1, %v76
    %v78 = vrot.slane %v69, %v77
    %v79 = vlaneseq
    %v80 = vshrl.u32 %v79, 7
    %v81 = vsub.s32 2, %v80
    %v82 = vrot.slane %v69, %v81
    %v83 = vlaneseq
    %v84 = vshrl.u32 %v83, 7
    %v85 = vsub.s32 3, %v84
    %v86 = vrot.slane %v69, %v85
    %v93 = vunpack.c.l.b16 %v67
    %v94 = vunpack.c.h.b16 %v67
    %v95 = vunpack.c.l.b16 %v68
    %v96 = vunpack.c.h.b16 %v68
    %v97 = vpack.c.b16 %v93, %v93
    %v98 = vpack.c.b16 %v94, %v94
    %v99 = vpack.c.b16 %v95, %v95
    %v100 = vpack.c.b16 %v96, %v96
    %vm101 = vcmask 64512
    %v103 = vsel %vm101, %v59, 0
    %v106 = vsel %vm101, %v60, 0
    %v109 = vsel %vm101, %v61, 0
    %v112 = vsel %vm101, %v62, 0
    %v115 = vsel %vm101, %v63, 0
    %v118 = vsel %vm101, %v64, 0
    %v121 = vsel %vm101, %v65, 0
    %v124 = vsel %vm101, %v66, 0
    %vm126 = vcmask 1043456
    %v128 = vsel %vm126, %v97, 0
    %v131 = vsel %vm126, %v98, 0
    %v134 = vsel %vm126, %v99, 0
    %v137 = vsel %vm126, %v100, 0
    %139 = vmatprep.subr.bf16.mxu0 0
    %140 = vmatpush1.bf16.msra.mxu0 0
    %141 = vmatprep.subr.bf16.mxu0 0
    %142 = vmatpush1.bf16.msra.mxu0 0
    %143 = vmatprep.subr.bf16.mxu0 0
    %144 = vmatpush1.bf16.msra.mxu0 0
    %145 = vmatprep.subr.bf16.mxu0 0
    %146 = vmatpush1.bf16.msra.mxu0 0
    %147 = vmatprep.subr.bf16.mxu0 0
    %148 = vmatpush1.bf16.msra.mxu0 0
    %149 = vmatprep.subr.bf16.mxu0 0
    %150 = vmatpush1.bf16.msra.mxu0 0
    %151 = vmatprep.subr.bf16.mxu0 0
    %152 = vmatpush1.bf16.msra.mxu0 0
    %153 = vmatprep.subr.bf16.mxu0 %v131
    %154 = vmatpush1.bf16.msra.mxu0 %v128
    %155 = vmatprep.subr.bf16.mxu0 0
    %156 = vmatpush2.bf16.msra.mxu0 0
    %157 = vmatprep.subr.bf16.mxu0 0
    %158 = vmatpush2.bf16.msra.mxu0 0
    %159 = vmatprep.subr.bf16.mxu0 0
    %160 = vmatpush2.bf16.msra.mxu0 0
    %161 = vmatprep.subr.bf16.mxu0 0
    %162 = vmatpush2.bf16.msra.mxu0 0
    %163 = vmatprep.subr.bf16.mxu0 0
    %164 = vmatpush2.bf16.msra.mxu0 0
    %165 = vmatprep.subr.bf16.mxu0 0
    %166 = vmatpush2.bf16.msra.mxu0 0
    %167 = vmatprep.subr.bf16.mxu0 0
    %168 = vmatpush2.bf16.msra.mxu0 0
    %169 = vmatprep.subr.bf16.mxu0 0
    %170 = vmatpush2.bf16.msra.mxu0 0
    %171 = vmatprep.mubr.bf16.mxu0 0
    %172 = vmatmul.mubr.bf16.gmra.mxu0 %v103
    %v173 = vpop.f32.mrf.mxu0
    %v174 = vadd.f32 %v74, %v173
    %v175 = vpop.f32.mrf.mxu0
    %v176 = vadd.f32 %v78, %v175
    %v177 = vpop.f32.mrf.mxu0
    %v178 = vadd.f32 %v74, %v177
    %v179 = vpop.f32.mrf.mxu0
    %v180 = vadd.f32 %v78, %v179
    %181 = vmatprep.mubr.bf16.mxu0 0
    %182 = vmatmul.mubr.bf16.gmra.mxu0 %v106
    %v183 = vpop.f32.mrf.mxu0
    %v184 = vadd.f32 %v74, %v183
    %v185 = vpop.f32.mrf.mxu0
    %v186 = vadd.f32 %v78, %v185
    %v187 = vpop.f32.mrf.mxu0
    %v188 = vadd.f32 %v74, %v187
    %v189 = vpop.f32.mrf.mxu0
    %v190 = vadd.f32 %v78, %v189
    %191 = vmatprep.mubr.bf16.mxu0 0
    %192 = vmatmul.mubr.bf16.gmra.mxu0 %v109
    %v193 = vpop.f32.mrf.mxu0
    %v194 = vadd.f32 %v74, %v193
    %v195 = vpop.f32.mrf.mxu0
    %v196 = vadd.f32 %v78, %v195
    %v197 = vpop.f32.mrf.mxu0
    %v198 = vadd.f32 %v74, %v197
    %v199 = vpop.f32.mrf.mxu0
    %v200 = vadd.f32 %v78, %v199
    %201 = vmatprep.mubr.bf16.mxu0 0
    %202 = vmatmul.mubr.bf16.gmra.mxu0 %v112
    %v203 = vpop.f32.mrf.mxu0
    %v204 = vadd.f32 %v74, %v203
    %v205 = vpop.f32.mrf.mxu0
    %v206 = vadd.f32 %v78, %v205
    %v207 = vpop.f32.mrf.mxu0
    %v208 = vadd.f32 %v74, %v207
    %v209 = vpop.f32.mrf.mxu0
    %v210 = vadd.f32 %v78, %v209
    %211 = vmatprep.mubr.bf16.mxu0 0
    %212 = vmatmul.mubr.bf16.gmra.mxu0 %v115
    %v213 = vpop.f32.mrf.mxu0
    %v214 = vadd.f32 %v74, %v213
    %v215 = vpop.f32.mrf.mxu0
    %v216 = vadd.f32 %v78, %v215
    %v217 = vpop.f32.mrf.mxu0
    %v218 = vadd.f32 %v74, %v217
    %v219 = vpop.f32.mrf.mxu0
    %v220 = vadd.f32 %v78, %v219
    %221 = vmatprep.mubr.bf16.mxu0 0
    %222 = vmatmul.mubr.bf16.gmra.mxu0 %v118
    %v223 = vpop.f32.mrf.mxu0
    %v224 = vadd.f32 %v74, %v223
    %v225 = vpop.f32.mrf.mxu0
    %v226 = vadd.f32 %v78, %v225
    %v227 = vpop.f32.mrf.mxu0
    %v228 = vadd.f32 %v74, %v227
    %v229 = vpop.f32.mrf.mxu0
    %v230 = vadd.f32 %v78, %v229
    %231 = vmatprep.mubr.bf16.mxu0 0
    %232 = vmatmul.mubr.bf16.gmra.mxu0 %v121
    %v233 = vpop.f32.mrf.mxu0
    %v234 = vadd.f32 %v74, %v233
    %v235 = vpop.f32.mrf.mxu0
    %v236 = vadd.f32 %v78, %v235
    %v237 = vpop.f32.mrf.mxu0
    %v238 = vadd.f32 %v74, %v237
    %v239 = vpop.f32.mrf.mxu0
    %v240 = vadd.f32 %v78, %v239
    %241 = vmatprep.mubr.bf16.mxu0 0
    %242 = vmatmul.mubr.bf16.gmra.mxu0 %v124
    %v243 = vpop.f32.mrf.mxu0
    %v244 = vadd.f32 %v74, %v243
    %v245 = vpop.f32.mrf.mxu0
    %v246 = vadd.f32 %v78, %v245
    %v247 = vpop.f32.mrf.mxu0
    %v248 = vadd.f32 %v74, %v247
    %v249 = vpop.f32.mrf.mxu0
    %v250 = vadd.f32 %v78, %v249
    %251 = vdwg.mxu0
    %252 = vmatprep.subr.bf16.mxu0 0
    %253 = vmatpush1.bf16.msra.mxu0 0
    %254 = vmatprep.subr.bf16.mxu0 0
    %255 = vmatpush1.bf16.msra.mxu0 0
    %256 = vmatprep.subr.bf16.mxu0 0
    %257 = vmatpush1.bf16.msra.mxu0 0
    %258 = vmatprep.subr.bf16.mxu0 0
    %259 = vmatpush1.bf16.msra.mxu0 0
    %260 = vmatprep.subr.bf16.mxu0 0
    %261 = vmatpush1.bf16.msra.mxu0 0
    %262 = vmatprep.subr.bf16.mxu0 0
    %263 = vmatpush1.bf16.msra.mxu0 0
    %264 = vmatprep.subr.bf16.mxu0 0
    %265 = vmatpush1.bf16.msra.mxu0 0
    %266 = vmatprep.subr.bf16.mxu0 %v137
    %267 = vmatpush1.bf16.msra.mxu0 %v134
    %268 = vmatprep.subr.bf16.mxu0 0
    %269 = vmatpush2.bf16.msra.mxu0 0
    %270 = vmatprep.subr.bf16.mxu0 0
    %271 = vmatpush2.bf16.msra.mxu0 0
    %272 = vmatprep.subr.bf16.mxu0 0
    %273 = vmatpush2.bf16.msra.mxu0 0
    %274 = vmatprep.subr.bf16.mxu0 0
    %275 = vmatpush2.bf16.msra.mxu0 0
    %276 = vmatprep.subr.bf16.mxu0 0
    %277 = vmatpush2.bf16.msra.mxu0 0
    %278 = vmatprep.subr.bf16.mxu0 0
    %279 = vmatpush2.bf16.msra.mxu0 0
    %280 = vmatprep.subr.bf16.mxu0 0
    %281 = vmatpush2.bf16.msra.mxu0 0
    %282 = vmatprep.subr.bf16.mxu0 0
    %283 = vmatpush2.bf16.msra.mxu0 0
    %284 = vmatprep.mubr.bf16.mxu0 0
    %285 = vmatmul.mubr.bf16.gmra.mxu0 %v103
    %v286 = vpop.f32.mrf.mxu0
    %v287 = vadd.f32 %v82, %v286
    %v288 = vpop.f32.mrf.mxu0
    %v289 = vadd.f32 %v86, %v288
    %v290 = vpop.f32.mrf.mxu0
    %v291 = vadd.f32 %v82, %v290
    %v292 = vpop.f32.mrf.mxu0
    %v293 = vadd.f32 %v86, %v292
    %294 = vmatprep.mubr.bf16.mxu0 0
    %295 = vmatmul.mubr.bf16.gmra.mxu0 %v106
    %v296 = vpop.f32.mrf.mxu0
    %v297 = vadd.f32 %v82, %v296
    %v298 = vpop.f32.mrf.mxu0
    %v299 = vadd.f32 %v86, %v298
    %v300 = vpop.f32.mrf.mxu0
    %v301 = vadd.f32 %v82, %v300
    %v302 = vpop.f32.mrf.mxu0
    %v303 = vadd.f32 %v86, %v302
    %304 = vmatprep.mubr.bf16.mxu0 0
    %305 = vmatmul.mubr.bf16.gmra.mxu0 %v109
    %v306 = vpop.f32.mrf.mxu0
    %v307 = vadd.f32 %v82, %v306
    %v308 = vpop.f32.mrf.mxu0
    %v309 = vadd.f32 %v86, %v308
    %v310 = vpop.f32.mrf.mxu0
    %v311 = vadd.f32 %v82, %v310
    %v312 = vpop.f32.mrf.mxu0
    %v313 = vadd.f32 %v86, %v312
    %314 = vmatprep.mubr.bf16.mxu0 0
    %315 = vmatmul.mubr.bf16.gmra.mxu0 %v112
    %v316 = vpop.f32.mrf.mxu0
    %v317 = vadd.f32 %v82, %v316
    %v318 = vpop.f32.mrf.mxu0
    %v319 = vadd.f32 %v86, %v318
    %v320 = vpop.f32.mrf.mxu0
    %v321 = vadd.f32 %v82, %v320
    %v322 = vpop.f32.mrf.mxu0
    %v323 = vadd.f32 %v86, %v322
    %324 = vmatprep.mubr.bf16.mxu0 0
    %325 = vmatmul.mubr.bf16.gmra.mxu0 %v115
    %v326 = vpop.f32.mrf.mxu0
    %v327 = vadd.f32 %v82, %v326
    %v328 = vpop.f32.mrf.mxu0
    %v329 = vadd.f32 %v86, %v328
    %v330 = vpop.f32.mrf.mxu0
    %v331 = vadd.f32 %v82, %v330
    %v332 = vpop.f32.mrf.mxu0
    %v333 = vadd.f32 %v86, %v332
    %334 = vmatprep.mubr.bf16.mxu0 0
    %335 = vmatmul.mubr.bf16.gmra.mxu0 %v118
    %v336 = vpop.f32.mrf.mxu0
    %v337 = vadd.f32 %v82, %v336
    %v338 = vpop.f32.mrf.mxu0
    %v339 = vadd.f32 %v86, %v338
    %v340 = vpop.f32.mrf.mxu0
    %v341 = vadd.f32 %v82, %v340
    %v342 = vpop.f32.mrf.mxu0
    %v343 = vadd.f32 %v86, %v342
    %344 = vmatprep.mubr.bf16.mxu0 0
    %345 = vmatmul.mubr.bf16.gmra.mxu0 %v121
    %v346 = vpop.f32.mrf.mxu0
    %v347 = vadd.f32 %v82, %v346
    %v348 = vpop.f32.mrf.mxu0
    %v349 = vadd.f32 %v86, %v348
    %v350 = vpop.f32.mrf.mxu0
    %v351 = vadd.f32 %v82, %v350
    %v352 = vpop.f32.mrf.mxu0
    %v353 = vadd.f32 %v86, %v352
    %354 = vmatprep.mubr.bf16.mxu0 0
    %355 = vmatmul.mubr.bf16.gmra.mxu0 %v124
    %v356 = vpop.f32.mrf.mxu0
    %v357 = vadd.f32 %v82, %v356
    %v358 = vpop.f32.mrf.mxu0
    %v359 = vadd.f32 %v86, %v358
    %v360 = vpop.f32.mrf.mxu0
    %v361 = vadd.f32 %v82, %v360
    %v362 = vpop.f32.mrf.mxu0
    %v363 = vadd.f32 %v86, %v362
    %364 = vdwg.mxu0
    %v365 = vmax.f32 %v174, 0.0
    %v366 = vmax.f32 %v176, 0.0
    %v367 = vmax.f32 %v287, 0.0
    %v368 = vmax.f32 %v289, 0.0
    %v369 = vmax.f32 %v178, 0.0
    %v370 = vmax.f32 %v180, 0.0
    %v371 = vmax.f32 %v291, 0.0
    %v372 = vmax.f32 %v293, 0.0
    %v373 = vmax.f32 %v184, 0.0
    %v374 = vmax.f32 %v186, 0.0
    %v375 = vmax.f32 %v297, 0.0
    %v376 = vmax.f32 %v299, 0.0
    %v377 = vmax.f32 %v188, 0.0
    %v378 = vmax.f32 %v190, 0.0
    %v379 = vmax.f32 %v301, 0.0
    %v380 = vmax.f32 %v303, 0.0
    %v381 = vmax.f32 %v194, 0.0
    %v382 = vmax.f32 %v196, 0.0
    %v383 = vmax.f32 %v307, 0.0
    %v384 = vmax.f32 %v309, 0.0
    %v385 = vmax.f32 %v198, 0.0
    %v386 = vmax.f32 %v200, 0.0
    %v387 = vmax.f32 %v311, 0.0
    %v388 = vmax.f32 %v313, 0.0
    %v389 = vmax.f32 %v204, 0.0
    %v390 = vmax.f32 %v206, 0.0
    %v391 = vmax.f32 %v317, 0.0
    %v392 = vmax.f32 %v319, 0.0
    %v393 = vmax.f32 %v208, 0.0
    %v394 = vmax.f32 %v210, 0.0
    %v395 = vmax.f32 %v321, 0.0
    %v396 = vmax.f32 %v323, 0.0
    %v397 = vmax.f32 %v214, 0.0
    %v398 = vmax.f32 %v216, 0.0
    %v399 = vmax.f32 %v327, 0.0
    %v400 = vmax.f32 %v329, 0.0
    %v401 = vmax.f32 %v218, 0.0
    %v402 = vmax.f32 %v220, 0.0
    %v403 = vmax.f32 %v331, 0.0
    %v404 = vmax.f32 %v333, 0.0
    %v405 = vmax.f32 %v224, 0.0
    %v406 = vmax.f32 %v226, 0.0
    %v407 = vmax.f32 %v337, 0.0
    %v408 = vmax.f32 %v339, 0.0
    %v409 = vmax.f32 %v228, 0.0
    %v410 = vmax.f32 %v230, 0.0
    %v411 = vmax.f32 %v341, 0.0
    %v412 = vmax.f32 %v343, 0.0
    %v413 = vmax.f32 %v234, 0.0
    %v414 = vmax.f32 %v236, 0.0
    %v415 = vmax.f32 %v347, 0.0
    %v416 = vmax.f32 %v349, 0.0
    %v417 = vmax.f32 %v238, 0.0
    %v418 = vmax.f32 %v240, 0.0
    %v419 = vmax.f32 %v351, 0.0
    %v420 = vmax.f32 %v353, 0.0
    %v421 = vmax.f32 %v244, 0.0
    %v422 = vmax.f32 %v246, 0.0
    %v423 = vmax.f32 %v357, 0.0
    %v424 = vmax.f32 %v359, 0.0
    %v425 = vmax.f32 %v248, 0.0
    %v426 = vmax.f32 %v250, 0.0
    %v427 = vmax.f32 %v361, 0.0
    %v428 = vmax.f32 %v363, 0.0
    %v429 = vpack.c.bf16 %v369, %v365
    %v430 = vpack.c.bf16 %v370, %v366
    %v431 = vpack.c.bf16 %v371, %v367
    %v432 = vpack.c.bf16 %v372, %v368
    %v433 = vpack.c.bf16 %v377, %v373
    %v434 = vpack.c.bf16 %v378, %v374
    %v435 = vpack.c.bf16 %v379, %v375
    %v436 = vpack.c.bf16 %v380, %v376
    %v437 = vpack.c.bf16 %v385, %v381
    %v438 = vpack.c.bf16 %v386, %v382
    %v439 = vpack.c.bf16 %v387, %v383
    %v440 = vpack.c.bf16 %v388, %v384
    %v441 = vpack.c.bf16 %v393, %v389
    %v442 = vpack.c.bf16 %v394, %v390
    %v443 = vpack.c.bf16 %v395, %v391
    %v444 = vpack.c.bf16 %v396, %v392
    %v445 = vpack.c.bf16 %v401, %v397
    %v446 = vpack.c.bf16 %v402, %v398
    %v447 = vpack.c.bf16 %v403, %v399
    %v448 = vpack.c.bf16 %v404, %v400
    %v449 = vpack.c.bf16 %v409, %v405
    %v450 = vpack.c.bf16 %v410, %v406
    %v451 = vpack.c.bf16 %v411, %v407
    %v452 = vpack.c.bf16 %v412, %v408
    %v453 = vpack.c.bf16 %v417, %v413
    %v454 = vpack.c.bf16 %v418, %v414
    %v455 = vpack.c.bf16 %v419, %v415
    %v456 = vpack.c.bf16 %v420, %v416
    %v457 = vpack.c.bf16 %v425, %v421
    %v458 = vpack.c.bf16 %v426, %v422
    %v459 = vpack.c.bf16 %v427, %v423
    %v460 = vpack.c.bf16 %v428, %v424
    %v461 = vld [vmem:[#allocation3] sm:$0xff]
    %v462 = vld [vmem:[#allocation3 + $0x8] sm:$0xf]
    %v463 = vld [vmem:[#allocation3 + $0xc] sm:$0xff]
    %v464 = vld [vmem:[#allocation3 + $0x14] sm:$0xf]
    %v465 = vld [vmem:[#allocation3 + $0x18] sm:$0xff]
    %v466 = vld [vmem:[#allocation3 + $0x20] sm:$0xf]
    %v467 = vld [vmem:[#allocation3 + $0x24] sm:$0xff]
    %v468 = vld [vmem:[#allocation3 + $0x2c] sm:$0xf]
    %v469 = vld [vmem:[#allocation3 + $0x30] sm:$0xff]
    %v470 = vld [vmem:[#allocation3 + $0x38] sm:$0xf]
    %v471 = vld [vmem:[#allocation3 + $0x3c] sm:$0xff]
    %v472 = vld [vmem:[#allocation3 + $0x44] sm:$0xf]
    %v473 = vld [vmem:[#allocation3 + $0x48] sm:$0xff]
    %v474 = vld [vmem:[#allocation3 + $0x50] sm:$0xf]
    %v475 = vld [vmem:[#allocation3 + $0x54] sm:$0xff]
    %v476 = vld [vmem:[#allocation3 + $0x5c] sm:$0xf]
    %v477 = vld [vmem:[#allocation3 + $0x60] sm:$0xff]
    %v478 = vld [vmem:[#allocation3 + $0x68] sm:$0xf]
    %v479 = vld [vmem:[#allocation3 + $0x6c] sm:$0xff]
    %v480 = vld [vmem:[#allocation3 + $0x74] sm:$0xf]
    %v481 = vld [vmem:[#allocation3 + $0x78] sm:$0xff]
    %v482 = vld [vmem:[#allocation3 + $0x80] sm:$0xf]
    %v483 = vld [vmem:[#allocation3 + $0x84] sm:$0xff]
    %v484 = vld [vmem:[#allocation3 + $0x8c] sm:$0xf]
    %v485 = vld [vmem:[#allocation3 + $0x90] sm:$0xff]
    %v486 = vld [vmem:[#allocation3 + $0x98] sm:$0xf]
    %v487 = vld [vmem:[#allocation3 + $0x9c] sm:$0xff]
    %v488 = vld [vmem:[#allocation3 + $0xa4] sm:$0xf]
    %v489 = vld [vmem:[#allocation3 + $0xa8] sm:$0xff]
    %v490 = vld [vmem:[#allocation3 + $0xb0] sm:$0xf]
    %v491 = vld [vmem:[#allocation3 + $0xb4] sm:$0xff]
    %v492 = vld [vmem:[#allocation3 + $0xbc] sm:$0xf]
    %v493 = vld [vmem:[#allocation3 + $0xc0] sm:$0xff]
    %v494 = vld [vmem:[#allocation3 + $0xc8] sm:$0xf]
    %v495 = vld [vmem:[#allocation3 + $0xcc] sm:$0xff]
    %v496 = vld [vmem:[#allocation3 + $0xd4] sm:$0xf]
    %v497 = vld [vmem:[#allocation3 + $0xd8] sm:$0xff]
    %v498 = vld [vmem:[#allocation3 + $0xe0] sm:$0xf]
    %v499 = vld [vmem:[#allocation3 + $0xe4] sm:$0xff]
    %v500 = vld [vmem:[#allocation3 + $0xec] sm:$0xf]
    %v501 = vld [vmem:[#allocation3 + $0xf0] sm:$0xff]
    %v502 = vld [vmem:[#allocation3 + $0xf8] sm:$0xf]
    %v503 = vld [vmem:[#allocation3 + $0xfc] sm:$0xff]
    %v504 = vld [vmem:[#allocation3 + $0x104] sm:$0xf]
    %v505 = vld [vmem:[#allocation3 + $0x108] sm:$0xff]
    %v506 = vld [vmem:[#allocation3 + $0x110] sm:$0xf]
    %v507 = vld [vmem:[#allocation3 + $0x114] sm:$0xff]
    %v508 = vld [vmem:[#allocation3 + $0x11c] sm:$0xf]
    %v509 = vld [vmem:[#allocation3 + $0x120] sm:$0xff]
    %v510 = vld [vmem:[#allocation3 + $0x128] sm:$0xf]
    %v511 = vld [vmem:[#allocation3 + $0x12c] sm:$0xff]
    %v512 = vld [vmem:[#allocation3 + $0x134] sm:$0xf]
    %v513 = vld [vmem:[#allocation3 + $0x138] sm:$0xff]
    %v514 = vld [vmem:[#allocation3 + $0x140] sm:$0xf]
    %v515 = vld [vmem:[#allocation3 + $0x144] sm:$0xff]
    %v516 = vld [vmem:[#allocation3 + $0x14c] sm:$0xf]
    %v517 = vld [vmem:[#allocation3 + $0x150] sm:$0xff]
    %v518 = vld [vmem:[#allocation3 + $0x158] sm:$0xf]
    %v519 = vld [vmem:[#allocation3 + $0x15c] sm:$0xff]
    %v520 = vld [vmem:[#allocation3 + $0x164] sm:$0xf]
    %v521 = vld [vmem:[#allocation3 + $0x168] sm:$0xff]
    %v522 = vld [vmem:[#allocation3 + $0x170] sm:$0xf]
    %v523 = vld [vmem:[#allocation3 + $0x174] sm:$0xff]
    %v524 = vld [vmem:[#allocation3 + $0x17c] sm:$0xf]
    %v525 = vld [vmem:[#allocation3 + $0x180] sm:$0xff]
    %v526 = vld [vmem:[#allocation3 + $0x188] sm:$0xf]
    %v527 = vld [vmem:[#allocation3 + $0x18c] sm:$0xff]
    %v528 = vld [vmem:[#allocation3 + $0x194] sm:$0xf]
    %v529 = vld [vmem:[#allocation3 + $0x198] sm:$0xff]
    %v530 = vld [vmem:[#allocation3 + $0x1a0] sm:$0xf]
    %v531 = vld [vmem:[#allocation3 + $0x1a4] sm:$0xff]
    %v532 = vld [vmem:[#allocation3 + $0x1ac] sm:$0xf]
    %v533 = vld [vmem:[#allocation3 + $0x1b0] sm:$0xff]
    %v534 = vld [vmem:[#allocation3 + $0x1b8] sm:$0xf]
    %v535 = vld [vmem:[#allocation3 + $0x1bc] sm:$0xff]
    %v536 = vld [vmem:[#allocation3 + $0x1c4] sm:$0xf]
    %v537 = vld [vmem:[#allocation3 + $0x1c8] sm:$0xff]
    %v538 = vld [vmem:[#allocation3 + $0x1d0] sm:$0xf]
    %v539 = vld [vmem:[#allocation3 + $0x1d4] sm:$0xff]
    %v540 = vld [vmem:[#allocation3 + $0x1dc] sm:$0xf]
    %v541 = vld [vmem:[#allocation3 + $0x1e0] sm:$0xff]
    %v542 = vld [vmem:[#allocation3 + $0x1e8] sm:$0xf]
    %v543 = vld [vmem:[#allocation3 + $0x1ec] sm:$0xff]
    %v544 = vld [vmem:[#allocation3 + $0x1f4] sm:$0xf]
    %v545 = vld [vmem:[#allocation3 + $0x1f8] sm:$0xff]
    %v546 = vld [vmem:[#allocation3 + $0x200] sm:$0xf]
    %v547 = vld [vmem:[#allocation3 + $0x204] sm:$0xff]
    %v548 = vld [vmem:[#allocation3 + $0x20c] sm:$0xf]
    %v549 = vld [vmem:[#allocation3 + $0x210] sm:$0xff]
    %v550 = vld [vmem:[#allocation3 + $0x218] sm:$0xf]
    %v551 = vld [vmem:[#allocation3 + $0x21c] sm:$0xff]
    %v552 = vld [vmem:[#allocation3 + $0x224] sm:$0xf]
    %v553 = vld [vmem:[#allocation3 + $0x228] sm:$0xff]
    %v554 = vld [vmem:[#allocation3 + $0x230] sm:$0xf]
    %v555 = vld [vmem:[#allocation3 + $0x234] sm:$0xff]
    %v556 = vld [vmem:[#allocation3 + $0x23c] sm:$0xf]
    %v557 = vld [vmem:[#allocation3 + $0x240] sm:$0xff]
    %v558 = vld [vmem:[#allocation3 + $0x248] sm:$0xf]
    %v559 = vld [vmem:[#allocation3 + $0x24c] sm:$0xff]
    %v560 = vld [vmem:[#allocation3 + $0x254] sm:$0xf]
    %v561 = vld [vmem:[#allocation3 + $0x258] sm:$0xff]
    %v562 = vld [vmem:[#allocation3 + $0x260] sm:$0xf]
    %v563 = vld [vmem:[#allocation3 + $0x264] sm:$0xff]
    %v564 = vld [vmem:[#allocation3 + $0x26c] sm:$0xf]
    %v565 = vld [vmem:[#allocation3 + $0x270] sm:$0xff]
    %v566 = vld [vmem:[#allocation3 + $0x278] sm:$0xf]
    %v567 = vld [vmem:[#allocation3 + $0x27c] sm:$0xff]
    %v568 = vld [vmem:[#allocation3 + $0x284] sm:$0xf]
    %v569 = vld [vmem:[#allocation3 + $0x288] sm:$0xff]
    %v570 = vld [vmem:[#allocation3 + $0x290] sm:$0xf]
    %v571 = vld [vmem:[#allocation3 + $0x294] sm:$0xff]
    %v572 = vld [vmem:[#allocation3 + $0x29c] sm:$0xf]
    %v573 = vld [vmem:[#allocation3 + $0x2a0] sm:$0xff]
    %v574 = vld [vmem:[#allocation3 + $0x2a8] sm:$0xf]
    %v575 = vld [vmem:[#allocation3 + $0x2ac] sm:$0xff]
    %v576 = vld [vmem:[#allocation3 + $0x2b4] sm:$0xf]
    %v577 = vld [vmem:[#allocation3 + $0x2b8] sm:$0xff]
    %v578 = vld [vmem:[#allocation3 + $0x2c0] sm:$0xf]
    %v579 = vld [vmem:[#allocation3 + $0x2c4] sm:$0xff]
    %v580 = vld [vmem:[#allocation3 + $0x2cc] sm:$0xf]
    %v581 = vld [vmem:[#allocation3 + $0x2d0] sm:$0xff]
    %v582 = vld [vmem:[#allocation3 + $0x2d8] sm:$0xf]
    %v583 = vld [vmem:[#allocation3 + $0x2dc] sm:$0xff]
    %v584 = vld [vmem:[#allocation3 + $0x2e4] sm:$0xf]
    %v585 = vld [vmem:[#allocation3 + $0x2e8] sm:$0xff]
    %v586 = vld [vmem:[#allocation3 + $0x2f0] sm:$0xf]
    %v587 = vld [vmem:[#allocation3 + $0x2f4] sm:$0xff]
    %v588 = vld [vmem:[#allocation3 + $0x2fc] sm:$0xf]
    %v589 = vld [vmem:[%s4] sm:$0x7]
    %v591 = vlaneseq
    %v592 = vshrl.u32 %v591, 7
    %v593 = vsub.s32 0, %v592
    %v594 = vrot.slane %v589, %v593
    %v595 = vlaneseq
    %v596 = vshrl.u32 %v595, 7
    %v597 = vsub.s32 1, %v596
    %v598 = vrot.slane %v589, %v597
    %v599 = vlaneseq
    %v600 = vshrl.u32 %v599, 7
    %v601 = vsub.s32 2, %v600
    %v602 = vrot.slane %v589, %v601
    %v734 = vunpack.c.l.b16 %v461
    %v735 = vunpack.c.h.b16 %v461
    %v736 = vunpack.c.l.b16 %v462
    %v737 = vunpack.c.l.b16 %v463
    %v738 = vunpack.c.h.b16 %v463
    %v739 = vunpack.c.l.b16 %v464
    %v740 = vunpack.c.l.b16 %v465
    %v741 = vunpack.c.h.b16 %v465
    %v742 = vunpack.c.l.b16 %v466
    %v743 = vunpack.c.l.b16 %v467
    %v744 = vunpack.c.h.b16 %v467
    %v745 = vunpack.c.l.b16 %v468
    %v746 = vunpack.c.l.b16 %v469
    %v747 = vunpack.c.h.b16 %v469
    %v748 = vunpack.c.l.b16 %v470
    %v749 = vunpack.c.l.b16 %v471
    %v750 = vunpack.c.h.b16 %v471
    %v751 = vunpack.c.l.b16 %v472
    %v752 = vunpack.c.l.b16 %v473
    %v753 = vunpack.c.h.b16 %v473
    %v754 = vunpack.c.l.b16 %v474
    %v755 = vunpack.c.l.b16 %v475
    %v756 = vunpack.c.h.b16 %v475
    %v757 = vunpack.c.l.b16 %v476
    %v758 = vunpack.c.l.b16 %v477
    %v759 = vunpack.c.h.b16 %v477
    %v760 = vunpack.c.l.b16 %v478
    %v761 = vunpack.c.l.b16 %v479
    %v762 = vunpack.c.h.b16 %v479
    %v763 = vunpack.c.l.b16 %v480
    %v764 = vunpack.c.l.b16 %v481
    %v765 = vunpack.c.h.b16 %v481
    %v766 = vunpack.c.l.b16 %v482
    %v767 = vunpack.c.l.b16 %v483
    %v768 = vunpack.c.h.b16 %v483
    %v769 = vunpack.c.l.b16 %v484
    %v770 = vunpack.c.l.b16 %v485
    %v771 = vunpack.c.h.b16 %v485
    %v772 = vunpack.c.l.b16 %v486
    %v773 = vunpack.c.l.b16 %v487
    %v774 = vunpack.c.h.b16 %v487
    %v775 = vunpack.c.l.b16 %v488
    %v776 = vunpack.c.l.b16 %v489
    %v777 = vunpack.c.h.b16 %v489
    %v778 = vunpack.c.l.b16 %v490
    %v779 = vunpack.c.l.b16 %v491
    %v780 = vunpack.c.h.b16 %v491
    %v781 = vunpack.c.l.b16 %v492
    %v782 = vunpack.c.l.b16 %v493
    %v783 = vunpack.c.h.b16 %v493
    %v784 = vunpack.c.l.b16 %v494
    %v785 = vunpack.c.l.b16 %v495
    %v786 = vunpack.c.h.b16 %v495
    %v787 = vunpack.c.l.b16 %v496
    %v788 = vunpack.c.l.b16 %v497
    %v789 = vunpack.c.h.b16 %v497
    %v790 = vunpack.c.l.b16 %v498
    %v791 = vunpack.c.l.b16 %v499
    %v792 = vunpack.c.h.b16 %v499
    %v793 = vunpack.c.l.b16 %v500
    %v794 = vunpack.c.l.b16 %v501
    %v795 = vunpack.c.h.b16 %v501
    %v796 = vunpack.c.l.b16 %v502
    %v797 = vunpack.c.l.b16 %v503
    %v798 = vunpack.c.h.b16 %v503
    %v799 = vunpack.c.l.b16 %v504
    %v800 = vunpack.c.l.b16 %v505
    %v801 = vunpack.c.h.b16 %v505
    %v802 = vunpack.c.l.b16 %v506
    %v803 = vunpack.c.l.b16 %v507
    %v804 = vunpack.c.h.b16 %v507
    %v805 = vunpack.c.l.b16 %v508
    %v806 = vunpack.c.l.b16 %v509
    %v807 = vunpack.c.h.b16 %v509
    %v808 = vunpack.c.l.b16 %v510
    %v809 = vunpack.c.l.b16 %v511
    %v810 = vunpack.c.h.b16 %v511
    %v811 = vunpack.c.l.b16 %v512
    %v812 = vunpack.c.l.b16 %v513
    %v813 = vunpack.c.h.b16 %v513
    %v814 = vunpack.c.l.b16 %v514
    %v815 = vunpack.c.l.b16 %v515
    %v816 = vunpack.c.h.b16 %v515
    %v817 = vunpack.c.l.b16 %v516
    %v818 = vunpack.c.l.b16 %v517
    %v819 = vunpack.c.h.b16 %v517
    %v820 = vunpack.c.l.b16 %v518
    %v821 = vunpack.c.l.b16 %v519
    %v822 = vunpack.c.h.b16 %v519
    %v823 = vunpack.c.l.b16 %v520
    %v824 = vunpack.c.l.b16 %v521
    %v825 = vunpack.c.h.b16 %v521
    %v826 = vunpack.c.l.b16 %v522
    %v827 = vunpack.c.l.b16 %v523
    %v828 = vunpack.c.h.b16 %v523
    %v829 = vunpack.c.l.b16 %v524
    %v830 = vunpack.c.l.b16 %v525
    %v831 = vunpack.c.h.b16 %v525
    %v832 = vunpack.c.l.b16 %v526
    %v833 = vunpack.c.l.b16 %v527
    %v834 = vunpack.c.h.b16 %v527
    %v835 = vunpack.c.l.b16 %v528
    %v836 = vunpack.c.l.b16 %v529
    %v837 = vunpack.c.h.b16 %v529
    %v838 = vunpack.c.l.b16 %v530
    %v839 = vunpack.c.l.b16 %v531
    %v840 = vunpack.c.h.b16 %v531
    %v841 = vunpack.c.l.b16 %v532
    %v842 = vunpack.c.l.b16 %v533
    %v843 = vunpack.c.h.b16 %v533
    %v844 = vunpack.c.l.b16 %v534
    %v845 = vunpack.c.l.b16 %v535
    %v846 = vunpack.c.h.b16 %v535
    %v847 = vunpack.c.l.b16 %v536
    %v848 = vunpack.c.l.b16 %v537
    %v849 = vunpack.c.h.b16 %v537
    %v850 = vunpack.c.l.b16 %v538
    %v851 = vunpack.c.l.b16 %v539
    %v852 = vunpack.c.h.b16 %v539
    %v853 = vunpack.c.l.b16 %v540
    %v854 = vunpack.c.l.b16 %v541
    %v855 = vunpack.c.h.b16 %v541
    %v856 = vunpack.c.l.b16 %v542
    %v857 = vunpack.c.l.b16 %v543
    %v858 = vunpack.c.h.b16 %v543
    %v859 = vunpack.c.l.b16 %v544
    %v860 = vunpack.c.l.b16 %v545
    %v861 = vunpack.c.h.b16 %v545
    %v862 = vunpack.c.l.b16 %v546
    %v863 = vunpack.c.l.b16 %v547
    %v864 = vunpack.c.h.b16 %v547
    %v865 = vunpack.c.l.b16 %v548
    %v866 = vunpack.c.l.b16 %v549
    %v867 = vunpack.c.h.b16 %v549
    %v868 = vunpack.c.l.b16 %v550
    %v869 = vunpack.c.l.b16 %v551
    %v870 = vunpack.c.h.b16 %v551
    %v871 = vunpack.c.l.b16 %v552
    %v872 = vunpack.c.l.b16 %v553
    %v873 = vunpack.c.h.b16 %v553
    %v874 = vunpack.c.l.b16 %v554
    %v875 = vunpack.c.l.b16 %v555
    %v876 = vunpack.c.h.b16 %v555
    %v877 = vunpack.c.l.b16 %v556
    %v878 = vunpack.c.l.b16 %v557
    %v879 = vunpack.c.h.b16 %v557
    %v880 = vunpack.c.l.b16 %v558
    %v881 = vunpack.c.l.b16 %v559
    %v882 = vunpack.c.h.b16 %v559
    %v883 = vunpack.c.l.b16 %v560
    %v884 = vunpack.c.l.b16 %v561
    %v885 = vunpack.c.h.b16 %v561
    %v886 = vunpack.c.l.b16 %v562
    %v887 = vunpack.c.l.b16 %v563
    %v888 = vunpack.c.h.b16 %v563
    %v889 = vunpack.c.l.b16 %v564
    %v890 = vunpack.c.l.b16 %v565
    %v891 = vunpack.c.h.b16 %v565
    %v892 = vunpack.c.l.b16 %v566
    %v893 = vunpack.c.l.b16 %v567
    %v894 = vunpack.c.h.b16 %v567
    %v895 = vunpack.c.l.b16 %v568
    %v896 = vunpack.c.l.b16 %v569
    %v897 = vunpack.c.h.b16 %v569
    %v898 = vunpack.c.l.b16 %v570
    %v899 = vunpack.c.l.b16 %v571
    %v900 = vunpack.c.h.b16 %v571
    %v901 = vunpack.c.l.b16 %v572
    %v902 = vunpack.c.l.b16 %v573
    %v903 = vunpack.c.h.b16 %v573
    %v904 = vunpack.c.l.b16 %v574
    %v905 = vunpack.c.l.b16 %v575
    %v906 = vunpack.c.h.b16 %v575
    %v907 = vunpack.c.l.b16 %v576
    %v908 = vunpack.c.l.b16 %v577
    %v909 = vunpack.c.h.b16 %v577
    %v910 = vunpack.c.l.b16 %v578
    %v911 = vunpack.c.l.b16 %v579
    %v912 = vunpack.c.h.b16 %v579
    %v913 = vunpack.c.l.b16 %v580
    %v914 = vunpack.c.l.b16 %v581
    %v915 = vunpack.c.h.b16 %v581
    %v916 = vunpack.c.l.b16 %v582
    %v917 = vunpack.c.l.b16 %v583
    %v918 = vunpack.c.h.b16 %v583
    %v919 = vunpack.c.l.b16 %v584
    %v920 = vunpack.c.l.b16 %v585
    %v921 = vunpack.c.h.b16 %v585
    %v922 = vunpack.c.l.b16 %v586
    %v923 = vunpack.c.l.b16 %v587
    %v924 = vunpack.c.h.b16 %v587
    %v925 = vunpack.c.l.b16 %v588
    %v926 = vpack.c.b16 %v737, %v734
    %v927 = vpack.c.b16 %v738, %v735
    %v928 = vpack.c.b16 %v739, %v736
    %v929 = vpack.c.b16 %v743, %v740
    %v930 = vpack.c.b16 %v744, %v741
    %v931 = vpack.c.b16 %v745, %v742
    %v932 = vpack.c.b16 %v749, %v746
    %v933 = vpack.c.b16 %v750, %v747
    %v934 = vpack.c.b16 %v751, %v748
    %v935 = vpack.c.b16 %v755, %v752
    %v936 = vpack.c.b16 %v756, %v753
    %v937 = vpack.c.b16 %v757, %v754
    %v938 = vpack.c.b16 %v761, %v758
    %v939 = vpack.c.b16 %v762, %v759
    %v940 = vpack.c.b16 %v763, %v760
    %v941 = vpack.c.b16 %v767, %v764
    %v942 = vpack.c.b16 %v768, %v765
    %v943 = vpack.c.b16 %v769, %v766
    %v944 = vpack.c.b16 %v773, %v770
    %v945 = vpack.c.b16 %v774, %v771
    %v946 = vpack.c.b16 %v775, %v772
    %v947 = vpack.c.b16 %v779, %v776
    %v948 = vpack.c.b16 %v780, %v777
    %v949 = vpack.c.b16 %v781, %v778
    %v950 = vpack.c.b16 %v785, %v782
    %v951 = vpack.c.b16 %v786, %v783
    %v952 = vpack.c.b16 %v787, %v784
    %v953 = vpack.c.b16 %v791, %v788
    %v954 = vpack.c.b16 %v792, %v789
    %v955 = vpack.c.b16 %v793, %v790
    %v956 = vpack.c.b16 %v797, %v794
    %v957 = vpack.c.b16 %v798, %v795
    %v958 = vpack.c.b16 %v799, %v796
    %v959 = vpack.c.b16 %v803, %v800
    %v960 = vpack.c.b16 %v804, %v801
    %v961 = vpack.c.b16 %v805, %v802
    %v962 = vpack.c.b16 %v809, %v806
    %v963 = vpack.c.b16 %v810, %v807
    %v964 = vpack.c.b16 %v811, %v808
    %v965 = vpack.c.b16 %v815, %v812
    %v966 = vpack.c.b16 %v816, %v813
    %v967 = vpack.c.b16 %v817, %v814
    %v968 = vpack.c.b16 %v821, %v818
    %v969 = vpack.c.b16 %v822, %v819
    %v970 = vpack.c.b16 %v823, %v820
    %v971 = vpack.c.b16 %v827, %v824
    %v972 = vpack.c.b16 %v828, %v825
    %v973 = vpack.c.b16 %v829, %v826
    %v974 = vpack.c.b16 %v833, %v830
    %v975 = vpack.c.b16 %v834, %v831
    %v976 = vpack.c.b16 %v835, %v832
    %v977 = vpack.c.b16 %v839, %v836
    %v978 = vpack.c.b16 %v840, %v837
    %v979 = vpack.c.b16 %v841, %v838
    %v980 = vpack.c.b16 %v845, %v842
    %v981 = vpack.c.b16 %v846, %v843
    %v982 = vpack.c.b16 %v847, %v844
    %v983 = vpack.c.b16 %v851, %v848
    %v984 = vpack.c.b16 %v852, %v849
    %v985 = vpack.c.b16 %v853, %v850
    %v986 = vpack.c.b16 %v857, %v854
    %v987 = vpack.c.b16 %v858, %v855
    %v988 = vpack.c.b16 %v859, %v856
    %v989 = vpack.c.b16 %v863, %v860
    %v990 = vpack.c.b16 %v864, %v861
    %v991 = vpack.c.b16 %v865, %v862
    %v992 = vpack.c.b16 %v869, %v866
    %v993 = vpack.c.b16 %v870, %v867
    %v994 = vpack.c.b16 %v871, %v868
    %v995 = vpack.c.b16 %v875, %v872
    %v996 = vpack.c.b16 %v876, %v873
    %v997 = vpack.c.b16 %v877, %v874
    %v998 = vpack.c.b16 %v881, %v878
    %v999 = vpack.c.b16 %v882, %v879
    %v1000 = vpack.c.b16 %v883, %v880
    %v1001 = vpack.c.b16 %v887, %v884
    %v1002 = vpack.c.b16 %v888, %v885
    %v1003 = vpack.c.b16 %v889, %v886
    %v1004 = vpack.c.b16 %v893, %v890
    %v1005 = vpack.c.b16 %v894, %v891
    %v1006 = vpack.c.b16 %v895, %v892
    %v1007 = vpack.c.b16 %v899, %v896
    %v1008 = vpack.c.b16 %v900, %v897
    %v1009 = vpack.c.b16 %v901, %v898
    %v1010 = vpack.c.b16 %v905, %v902
    %v1011 = vpack.c.b16 %v906, %v903
    %v1012 = vpack.c.b16 %v907, %v904
    %v1013 = vpack.c.b16 %v911, %v908
    %v1014 = vpack.c.b16 %v912, %v909
    %v1015 = vpack.c.b16 %v913, %v910
    %v1016 = vpack.c.b16 %v917, %v914
    %v1017 = vpack.c.b16 %v918, %v915
    %v1018 = vpack.c.b16 %v919, %v916
    %v1019 = vpack.c.b16 %v923, %v920
    %v1020 = vpack.c.b16 %v924, %v921
    %v1021 = vpack.c.b16 %v925, %v922
    %1118 = vmatprep.subr.bf16.mxu0 %v948
    %1119 = vmatpush1.bf16.msra.mxu0 %v947
    %1120 = vmatprep.subr.bf16.mxu0 %v945
    %1121 = vmatpush1.bf16.msra.mxu0 %v944
    %1122 = vmatprep.subr.bf16.mxu0 %v942
    %1123 = vmatpush1.bf16.msra.mxu0 %v941
    %1124 = vmatprep.subr.bf16.mxu0 %v939
    %1125 = vmatpush1.bf16.msra.mxu0 %v938
    %1126 = vmatprep.subr.bf16.mxu0 %v936
    %1127 = vmatpush1.bf16.msra.mxu0 %v935
    %1128 = vmatprep.subr.bf16.mxu0 %v933
    %1129 = vmatpush1.bf16.msra.mxu0 %v932
    %1130 = vmatprep.subr.bf16.mxu0 %v930
    %1131 = vmatpush1.bf16.msra.mxu0 %v929
    %1132 = vmatprep.subr.bf16.mxu0 %v927
    %1133 = vmatpush1.bf16.msra.mxu0 %v926
    %1134 = vmatprep.subr.bf16.mxu0 %v972
    %1135 = vmatpush2.bf16.msra.mxu0 %v971
    %1136 = vmatprep.subr.bf16.mxu0 %v969
    %1137 = vmatpush2.bf16.msra.mxu0 %v968
    %1138 = vmatprep.subr.bf16.mxu0 %v966
    %1139 = vmatpush2.bf16.msra.mxu0 %v965
    %1140 = vmatprep.subr.bf16.mxu0 %v963
    %1141 = vmatpush2.bf16.msra.mxu0 %v962
    %1142 = vmatprep.subr.bf16.mxu0 %v960
    %1143 = vmatpush2.bf16.msra.mxu0 %v959
    %1144 = vmatprep.subr.bf16.mxu0 %v957
    %1145 = vmatpush2.bf16.msra.mxu0 %v956
    %1146 = vmatprep.subr.bf16.mxu0 %v954
    %1147 = vmatpush2.bf16.msra.mxu0 %v953
    %1148 = vmatprep.subr.bf16.mxu0 %v951
    %1149 = vmatpush2.bf16.msra.mxu0 %v950
    %1150 = vmatprep.mubr.bf16.mxu0 %v430
    %1151 = vmatmul.mubr.bf16.gmra.mxu0 %v429
    %v1152 = vpop.f32.mrf.mxu0
    %v1153 = vadd.f32 %v594, %v1152
    %v1154 = vpop.f32.mrf.mxu0
    %v1155 = vadd.f32 %v598, %v1154
    %v1156 = vpop.f32.mrf.mxu0
    %v1157 = vadd.f32 %v594, %v1156
    %v1158 = vpop.f32.mrf.mxu0
    %v1159 = vadd.f32 %v598, %v1158
    %1160 = vmatprep.mubr.bf16.mxu0 %v434
    %1161 = vmatmul.mubr.bf16.gmra.mxu0 %v433
    %v1162 = vpop.f32.mrf.mxu0
    %v1163 = vadd.f32 %v594, %v1162
    %v1164 = vpop.f32.mrf.mxu0
    %v1165 = vadd.f32 %v598, %v1164
    %v1166 = vpop.f32.mrf.mxu0
    %v1167 = vadd.f32 %v594, %v1166
    %v1168 = vpop.f32.mrf.mxu0
    %v1169 = vadd.f32 %v598, %v1168
    %1170 = vmatprep.mubr.bf16.mxu0 %v438
    %1171 = vmatmul.mubr.bf16.gmra.mxu0 %v437
    %v1172 = vpop.f32.mrf.mxu0
    %v1173 = vadd.f32 %v594, %v1172
    %v1174 = vpop.f32.mrf.mxu0
    %v1175 = vadd.f32 %v598, %v1174
    %v1176 = vpop.f32.mrf.mxu0
    %v1177 = vadd.f32 %v594, %v1176
    %v1178 = vpop.f32.mrf.mxu0
    %v1179 = vadd.f32 %v598, %v1178
    %1180 = vmatprep.mubr.bf16.mxu0 %v442
    %1181 = vmatmul.mubr.bf16.gmra.mxu0 %v441
    %v1182 = vpop.f32.mrf.mxu0
    %v1183 = vadd.f32 %v594, %v1182
    %v1184 = vpop.f32.mrf.mxu0
    %v1185 = vadd.f32 %v598, %v1184
    %v1186 = vpop.f32.mrf.mxu0
    %v1187 = vadd.f32 %v594, %v1186
    %v1188 = vpop.f32.mrf.mxu0
    %v1189 = vadd.f32 %v598, %v1188
    %1190 = vmatprep.mubr.bf16.mxu0 %v446
    %1191 = vmatmul.mubr.bf16.gmra.mxu0 %v445
    %v1192 = vpop.f32.mrf.mxu0
    %v1193 = vadd.f32 %v594, %v1192
    %v1194 = vpop.f32.mrf.mxu0
    %v1195 = vadd.f32 %v598, %v1194
    %v1196 = vpop.f32.mrf.mxu0
    %v1197 = vadd.f32 %v594, %v1196
    %v1198 = vpop.f32.mrf.mxu0
    %v1199 = vadd.f32 %v598, %v1198
    %1200 = vmatprep.mubr.bf16.mxu0 %v450
    %1201 = vmatmul.mubr.bf16.gmra.mxu0 %v449
    %v1202 = vpop.f32.mrf.mxu0
    %v1203 = vadd.f32 %v594, %v1202
    %v1204 = vpop.f32.mrf.mxu0
    %v1205 = vadd.f32 %v598, %v1204
    %v1206 = vpop.f32.mrf.mxu0
    %v1207 = vadd.f32 %v594, %v1206
    %v1208 = vpop.f32.mrf.mxu0
    %v1209 = vadd.f32 %v598, %v1208
    %1210 = vmatprep.mubr.bf16.mxu0 %v454
    %1211 = vmatmul.mubr.bf16.gmra.mxu0 %v453
    %v1212 = vpop.f32.mrf.mxu0
    %v1213 = vadd.f32 %v594, %v1212
    %v1214 = vpop.f32.mrf.mxu0
    %v1215 = vadd.f32 %v598, %v1214
    %v1216 = vpop.f32.mrf.mxu0
    %v1217 = vadd.f32 %v594, %v1216
    %v1218 = vpop.f32.mrf.mxu0
    %v1219 = vadd.f32 %v598, %v1218
    %1220 = vmatprep.mubr.bf16.mxu0 %v458
    %1221 = vmatmul.mubr.bf16.gmra.mxu0 %v457
    %v1222 = vpop.f32.mrf.mxu0
    %v1223 = vadd.f32 %v594, %v1222
    %v1224 = vpop.f32.mrf.mxu0
    %v1225 = vadd.f32 %v598, %v1224
    %v1226 = vpop.f32.mrf.mxu0
    %v1227 = vadd.f32 %v594, %v1226
    %v1228 = vpop.f32.mrf.mxu0
    %v1229 = vadd.f32 %v598, %v1228
    %1230 = vdwg.mxu0
    %1231 = vmatprep.subr.bf16.mxu0 %v996
    %1232 = vmatpush1.bf16.msra.mxu0 %v995
    %1233 = vmatprep.subr.bf16.mxu0 %v993
    %1234 = vmatpush1.bf16.msra.mxu0 %v992
    %1235 = vmatprep.subr.bf16.mxu0 %v990
    %1236 = vmatpush1.bf16.msra.mxu0 %v989
    %1237 = vmatprep.subr.bf16.mxu0 %v987
    %1238 = vmatpush1.bf16.msra.mxu0 %v986
    %1239 = vmatprep.subr.bf16.mxu0 %v984
    %1240 = vmatpush1.bf16.msra.mxu0 %v983
    %1241 = vmatprep.subr.bf16.mxu0 %v981
    %1242 = vmatpush1.bf16.msra.mxu0 %v980
    %1243 = vmatprep.subr.bf16.mxu0 %v978
    %1244 = vmatpush1.bf16.msra.mxu0 %v977
    %1245 = vmatprep.subr.bf16.mxu0 %v975
    %1246 = vmatpush1.bf16.msra.mxu0 %v974
    %1247 = vmatprep.subr.bf16.mxu0 %v1020
    %1248 = vmatpush2.bf16.msra.mxu0 %v1019
    %1249 = vmatprep.subr.bf16.mxu0 %v1017
    %1250 = vmatpush2.bf16.msra.mxu0 %v1016
    %1251 = vmatprep.subr.bf16.mxu0 %v1014
    %1252 = vmatpush2.bf16.msra.mxu0 %v1013
    %1253 = vmatprep.subr.bf16.mxu0 %v1011
    %1254 = vmatpush2.bf16.msra.mxu0 %v1010
    %1255 = vmatprep.subr.bf16.mxu0 %v1008
    %1256 = vmatpush2.bf16.msra.mxu0 %v1007
    %1257 = vmatprep.subr.bf16.mxu0 %v1005
    %1258 = vmatpush2.bf16.msra.mxu0 %v1004
    %1259 = vmatprep.subr.bf16.mxu0 %v1002
    %1260 = vmatpush2.bf16.msra.mxu0 %v1001
    %1261 = vmatprep.subr.bf16.mxu0 %v999
    %1262 = vmatpush2.bf16.msra.mxu0 %v998
    %1263 = vmatprep.mubr.bf16.mxu0 %v432
    %1264 = vmatmul.mubr.bf16.gmra.mxu0 %v431
    %v1265 = vpop.f32.mrf.mxu0
    %v1266 = vadd.f32 %v1153, %v1265
    %v1267 = vpop.f32.mrf.mxu0
    %v1268 = vadd.f32 %v1155, %v1267
    %v1269 = vpop.f32.mrf.mxu0
    %v1270 = vadd.f32 %v1157, %v1269
    %v1271 = vpop.f32.mrf.mxu0
    %v1272 = vadd.f32 %v1159, %v1271
    %1273 = vmatprep.mubr.bf16.mxu0 %v436
    %1274 = vmatmul.mubr.bf16.gmra.mxu0 %v435
    %v1275 = vpop.f32.mrf.mxu0
    %v1276 = vadd.f32 %v1163, %v1275
    %v1277 = vpop.f32.mrf.mxu0
    %v1278 = vadd.f32 %v1165, %v1277
    %v1279 = vpop.f32.mrf.mxu0
    %v1280 = vadd.f32 %v1167, %v1279
    %v1281 = vpop.f32.mrf.mxu0
    %v1282 = vadd.f32 %v1169, %v1281
    %1283 = vmatprep.mubr.bf16.mxu0 %v440
    %1284 = vmatmul.mubr.bf16.gmra.mxu0 %v439
    %v1285 = vpop.f32.mrf.mxu0
    %v1286 = vadd.f32 %v1173, %v1285
    %v1287 = vpop.f32.mrf.mxu0
    %v1288 = vadd.f32 %v1175, %v1287
    %v1289 = vpop.f32.mrf.mxu0
    %v1290 = vadd.f32 %v1177, %v1289
    %v1291 = vpop.f32.mrf.mxu0
    %v1292 = vadd.f32 %v1179, %v1291
    %1293 = vmatprep.mubr.bf16.mxu0 %v444
    %1294 = vmatmul.mubr.bf16.gmra.mxu0 %v443
    %v1295 = vpop.f32.mrf.mxu0
    %v1296 = vadd.f32 %v1183, %v1295
    %v1297 = vpop.f32.mrf.mxu0
    %v1298 = vadd.f32 %v1185, %v1297
    %v1299 = vpop.f32.mrf.mxu0
    %v1300 = vadd.f32 %v1187, %v1299
    %v1301 = vpop.f32.mrf.mxu0
    %v1302 = vadd.f32 %v1189, %v1301
    %1303 = vmatprep.mubr.bf16.mxu0 %v448
    %1304 = vmatmul.mubr.bf16.gmra.mxu0 %v447
    %v1305 = vpop.f32.mrf.mxu0
    %v1306 = vadd.f32 %v1193, %v1305
    %v1307 = vpop.f32.mrf.mxu0
    %v1308 = vadd.f32 %v1195, %v1307
    %v1309 = vpop.f32.mrf.mxu0
    %v1310 = vadd.f32 %v1197, %v1309
    %v1311 = vpop.f32.mrf.mxu0
    %v1312 = vadd.f32 %v1199, %v1311
    %1313 = vmatprep.mubr.bf16.mxu0 %v452
    %1314 = vmatmul.mubr.bf16.gmra.mxu0 %v451
    %v1315 = vpop.f32.mrf.mxu0
    %v1316 = vadd.f32 %v1203, %v1315
    %v1317 = vpop.f32.mrf.mxu0
    %v1318 = vadd.f32 %v1205, %v1317
    %v1319 = vpop.f32.mrf.mxu0
    %v1320 = vadd.f32 %v1207, %v1319
    %v1321 = vpop.f32.mrf.mxu0
    %v1322 = vadd.f32 %v1209, %v1321
    %1323 = vmatprep.mubr.bf16.mxu0 %v456
    %1324 = vmatmul.mubr.bf16.gmra.mxu0 %v455
    %v1325 = vpop.f32.mrf.mxu0
    %v1326 = vadd.f32 %v1213, %v1325
    %v1327 = vpop.f32.mrf.mxu0
    %v1328 = vadd.f32 %v1215, %v1327
    %v1329 = vpop.f32.mrf.mxu0
    %v1330 = vadd.f32 %v1217, %v1329
    %v1331 = vpop.f32.mrf.mxu0
    %v1332 = vadd.f32 %v1219, %v1331
    %1333 = vmatprep.mubr.bf16.mxu0 %v460
    %1334 = vmatmul.mubr.bf16.gmra.mxu0 %v459
    %v1335 = vpop.f32.mrf.mxu0
    %v1336 = vadd.f32 %v1223, %v1335
    %v1337 = vpop.f32.mrf.mxu0
    %v1338 = vadd.f32 %v1225, %v1337
    %v1339 = vpop.f32.mrf.mxu0
    %v1340 = vadd.f32 %v1227, %v1339
    %v1341 = vpop.f32.mrf.mxu0
    %v1342 = vadd.f32 %v1229, %v1341
    %1343 = vdwg.mxu0
    %1344 = vmatprep.subr.bf16.mxu0 0
    %1345 = vmatpush1.bf16.msra.mxu0 %v949
    %1346 = vmatprep.subr.bf16.mxu0 0
    %1347 = vmatpush1.bf16.msra.mxu0 %v946
    %1348 = vmatprep.subr.bf16.mxu0 0
    %1349 = vmatpush1.bf16.msra.mxu0 %v943
    %1350 = vmatprep.subr.bf16.mxu0 0
    %1351 = vmatpush1.bf16.msra.mxu0 %v940
    %1352 = vmatprep.subr.bf16.mxu0 0
    %1353 = vmatpush1.bf16.msra.mxu0 %v937
    %1354 = vmatprep.subr.bf16.mxu0 0
    %1355 = vmatpush1.bf16.msra.mxu0 %v934
    %1356 = vmatprep.subr.bf16.mxu0 0
    %1357 = vmatpush1.bf16.msra.mxu0 %v931
    %1358 = vmatprep.subr.bf16.mxu0 0
    %1359 = vmatpush1.bf16.msra.mxu0 %v928
    %1360 = vmatprep.subr.bf16.mxu0 0
    %1361 = vmatpush2.bf16.msra.mxu0 %v973
    %1362 = vmatprep.subr.bf16.mxu0 0
    %1363 = vmatpush2.bf16.msra.mxu0 %v970
    %1364 = vmatprep.subr.bf16.mxu0 0
    %1365 = vmatpush2.bf16.msra.mxu0 %v967
    %1366 = vmatprep.subr.bf16.mxu0 0
    %1367 = vmatpush2.bf16.msra.mxu0 %v964
    %1368 = vmatprep.subr.bf16.mxu0 0
    %1369 = vmatpush2.bf16.msra.mxu0 %v961
    %1370 = vmatprep.subr.bf16.mxu0 0
    %1371 = vmatpush2.bf16.msra.mxu0 %v958
    %1372 = vmatprep.subr.bf16.mxu0 0
    %1373 = vmatpush2.bf16.msra.mxu0 %v955
    %1374 = vmatprep.subr.bf16.mxu0 0
    %1375 = vmatpush2.bf16.msra.mxu0 %v952
    %1376 = vmatprep.mubr.bf16.mxu0 %v430
    %1377 = vmatmul.mubr.bf16.gmra.mxu0 %v429
    %v1378 = vpop.f32.mrf.mxu0
    %v1379 = vadd.f32 %v602, %v1378
    %v1380 = vpop.f32.mrf.mxu0
    %v1381 = vpop.f32.mrf.mxu0
    %v1382 = vadd.f32 %v602, %v1381
    %v1383 = vpop.f32.mrf.mxu0
    %1384 = vmatprep.mubr.bf16.mxu0 %v434
    %1385 = vmatmul.mubr.bf16.gmra.mxu0 %v433
    %v1386 = vpop.f32.mrf.mxu0
    %v1387 = vadd.f32 %v602, %v1386
    %v1388 = vpop.f32.mrf.mxu0
    %v1389 = vpop.f32.mrf.mxu0
    %v1390 = vadd.f32 %v602, %v1389
    %v1391 = vpop.f32.mrf.mxu0
    %1392 = vmatprep.mubr.bf16.mxu0 %v438
    %1393 = vmatmul.mubr.bf16.gmra.mxu0 %v437
    %v1394 = vpop.f32.mrf.mxu0
    %v1395 = vadd.f32 %v602, %v1394
    %v1396 = vpop.f32.mrf.mxu0
    %v1397 = vpop.f32.mrf.mxu0
    %v1398 = vadd.f32 %v602, %v1397
    %v1399 = vpop.f32.mrf.mxu0
    %1400 = vmatprep.mubr.bf16.mxu0 %v442
    %1401 = vmatmul.mubr.bf16.gmra.mxu0 %v441
    %v1402 = vpop.f32.mrf.mxu0
    %v1403 = vadd.f32 %v602, %v1402
    %v1404 = vpop.f32.mrf.mxu0
    %v1405 = vpop.f32.mrf.mxu0
    %v1406 = vadd.f32 %v602, %v1405
    %v1407 = vpop.f32.mrf.mxu0
    %1408 = vmatprep.mubr.bf16.mxu0 %v446
    %1409 = vmatmul.mubr.bf16.gmra.mxu0 %v445
    %v1410 = vpop.f32.mrf.mxu0
    %v1411 = vadd.f32 %v602, %v1410
    %v1412 = vpop.f32.mrf.mxu0
    %v1413 = vpop.f32.mrf.mxu0
    %v1414 = vadd.f32 %v602, %v1413
    %v1415 = vpop.f32.mrf.mxu0
    %1416 = vmatprep.mubr.bf16.mxu0 %v450
    %1417 = vmatmul.mubr.bf16.gmra.mxu0 %v449
    %v1418 = vpop.f32.mrf.mxu0
    %v1419 = vadd.f32 %v602, %v1418
    %v1420 = vpop.f32.mrf.mxu0
    %v1421 = vpop.f32.mrf.mxu0
    %v1422 = vadd.f32 %v602, %v1421
    %v1423 = vpop.f32.mrf.mxu0
    %1424 = vmatprep.mubr.bf16.mxu0 %v454
    %1425 = vmatmul.mubr.bf16.gmra.mxu0 %v453
    %v1426 = vpop.f32.mrf.mxu0
    %v1427 = vadd.f32 %v602, %v1426
    %v1428 = vpop.f32.mrf.mxu0
    %v1429 = vpop.f32.mrf.mxu0
    %v1430 = vadd.f32 %v602, %v1429
    %v1431 = vpop.f32.mrf.mxu0
    %1432 = vmatprep.mubr.bf16.mxu0 %v458
    %1433 = vmatmul.mubr.bf16.gmra.mxu0 %v457
    %v1434 = vpop.f32.mrf.mxu0
    %v1435 = vadd.f32 %v602, %v1434
    %v1436 = vpop.f32.mrf.mxu0
    %v1437 = vpop.f32.mrf.mxu0
    %v1438 = vadd.f32 %v602, %v1437
    %v1439 = vpop.f32.mrf.mxu0
    %1440 = vdwg.mxu0
    %1441 = vmatprep.subr.bf16.mxu0 0
    %1442 = vmatpush1.bf16.msra.mxu0 %v997
    %1443 = vmatprep.subr.bf16.mxu0 0
    %1444 = vmatpush1.bf16.msra.mxu0 %v994
    %1445 = vmatprep.subr.bf16.mxu0 0
    %1446 = vmatpush1.bf16.msra.mxu0 %v991
    %1447 = vmatprep.subr.bf16.mxu0 0
    %1448 = vmatpush1.bf16.msra.mxu0 %v988
    %1449 = vmatprep.subr.bf16.mxu0 0
    %1450 = vmatpush1.bf16.msra.mxu0 %v985
    %1451 = vmatprep.subr.bf16.mxu0 0
    %1452 = vmatpush1.bf16.msra.mxu0 %v982
    %1453 = vmatprep.subr.bf16.mxu0 0
    %1454 = vmatpush1.bf16.msra.mxu0 %v979
    %1455 = vmatprep.subr.bf16.mxu0 0
    %1456 = vmatpush1.bf16.msra.mxu0 %v976
    %1457 = vmatprep.subr.bf16.mxu0 0
    %1458 = vmatpush2.bf16.msra.mxu0 %v1021
    %1459 = vmatprep.subr.bf16.mxu0 0
    %1460 = vmatpush2.bf16.msra.mxu0 %v1018
    %1461 = vmatprep.subr.bf16.mxu0 0
    %1462 = vmatpush2.bf16.msra.mxu0 %v1015
    %1463 = vmatprep.subr.bf16.mxu0 0
    %1464 = vmatpush2.bf16.msra.mxu0 %v1012
    %1465 = vmatprep.subr.bf16.mxu0 0
    %1466 = vmatpush2.bf16.msra.mxu0 %v1009
    %1467 = vmatprep.subr.bf16.mxu0 0
    %1468 = vmatpush2.bf16.msra.mxu0 %v1006
    %1469 = vmatprep.subr.bf16.mxu0 0
    %1470 = vmatpush2.bf16.msra.mxu0 %v1003
    %1471 = vmatprep.subr.bf16.mxu0 0
    %1472 = vmatpush2.bf16.msra.mxu0 %v1000
    %1473 = vmatprep.mubr.bf16.mxu0 %v432
    %1474 = vmatmul.mubr.bf16.gmra.mxu0 %v431
    %v1475 = vpop.f32.mrf.mxu0
    %v1476 = vadd.f32 %v1379, %v1475
    %v1477 = vpop.f32.mrf.mxu0
    %v1478 = vpop.f32.mrf.mxu0
    %v1479 = vadd.f32 %v1382, %v1478
    %v1480 = vpop.f32.mrf.mxu0
    %1481 = vmatprep.mubr.bf16.mxu0 %v436
    %1482 = vmatmul.mubr.bf16.gmra.mxu0 %v435
    %v1483 = vpop.f32.mrf.mxu0
    %v1484 = vadd.f32 %v1387, %v1483
    %v1485 = vpop.f32.mrf.mxu0
    %v1486 = vpop.f32.mrf.mxu0
    %v1487 = vadd.f32 %v1390, %v1486
    %v1488 = vpop.f32.mrf.mxu0
    %1489 = vmatprep.mubr.bf16.mxu0 %v440
    %1490 = vmatmul.mubr.bf16.gmra.mxu0 %v439
    %v1491 = vpop.f32.mrf.mxu0
    %v1492 = vadd.f32 %v1395, %v1491
    %v1493 = vpop.f32.mrf.mxu0
    %v1494 = vpop.f32.mrf.mxu0
    %v1495 = vadd.f32 %v1398, %v1494
    %v1496 = vpop.f32.mrf.mxu0
    %1497 = vmatprep.mubr.bf16.mxu0 %v444
    %1498 = vmatmul.mubr.bf16.gmra.mxu0 %v443
    %v1499 = vpop.f32.mrf.mxu0
    %v1500 = vadd.f32 %v1403, %v1499
    %v1501 = vpop.f32.mrf.mxu0
    %v1502 = vpop.f32.mrf.mxu0
    %v1503 = vadd.f32 %v1406, %v1502
    %v1504 = vpop.f32.mrf.mxu0
    %1505 = vmatprep.mubr.bf16.mxu0 %v448
    %1506 = vmatmul.mubr.bf16.gmra.mxu0 %v447
    %v1507 = vpop.f32.mrf.mxu0
    %v1508 = vadd.f32 %v1411, %v1507
    %v1509 = vpop.f32.mrf.mxu0
    %v1510 = vpop.f32.mrf.mxu0
    %v1511 = vadd.f32 %v1414, %v1510
    %v1512 = vpop.f32.mrf.mxu0
    %1513 = vmatprep.mubr.bf16.mxu0 %v452
    %1514 = vmatmul.mubr.bf16.gmra.mxu0 %v451
    %v1515 = vpop.f32.mrf.mxu0
    %v1516 = vadd.f32 %v1419, %v1515
    %v1517 = vpop.f32.mrf.mxu0
    %v1518 = vpop.f32.mrf.mxu0
    %v1519 = vadd.f32 %v1422, %v1518
    %v1520 = vpop.f32.mrf.mxu0
    %1521 = vmatprep.mubr.bf16.mxu0 %v456
    %1522 = vmatmul.mubr.bf16.gmra.mxu0 %v455
    %v1523 = vpop.f32.mrf.mxu0
    %v1524 = vadd.f32 %v1427, %v1523
    %v1525 = vpop.f32.mrf.mxu0
    %v1526 = vpop.f32.mrf.mxu0
    %v1527 = vadd.f32 %v1430, %v1526
    %v1528 = vpop.f32.mrf.mxu0
    %1529 = vmatprep.mubr.bf16.mxu0 %v460
    %1530 = vmatmul.mubr.bf16.gmra.mxu0 %v459
    %v1531 = vpop.f32.mrf.mxu0
    %v1532 = vadd.f32 %v1435, %v1531
    %v1533 = vpop.f32.mrf.mxu0
    %v1534 = vpop.f32.mrf.mxu0
    %v1535 = vadd.f32 %v1438, %v1534
    %v1536 = vpop.f32.mrf.mxu0
    %1537 = vdwg.mxu0
    %v1538 = vmax.f32 %v1266, 0.0
    %v1539 = vmax.f32 %v1268, 0.0
    %v1540 = vmax.f32 %v1476, 0.0
    %v1541 = vmax.f32 %v1270, 0.0
    %v1542 = vmax.f32 %v1272, 0.0
    %v1543 = vmax.f32 %v1479, 0.0
    %v1544 = vmax.f32 %v1276, 0.0
    %v1545 = vmax.f32 %v1278, 0.0
    %v1546 = vmax.f32 %v1484, 0.0
    %v1547 = vmax.f32 %v1280, 0.0
    %v1548 = vmax.f32 %v1282, 0.0
    %v1549 = vmax.f32 %v1487, 0.0
    %v1550 = vmax.f32 %v1286, 0.0
    %v1551 = vmax.f32 %v1288, 0.0
    %v1552 = vmax.f32 %v1492, 0.0
    %v1553 = vmax.f32 %v1290, 0.0
    %v1554 = vmax.f32 %v1292, 0.0
    %v1555 = vmax.f32 %v1495, 0.0
    %v1556 = vmax.f32 %v1296, 0.0
    %v1557 = vmax.f32 %v1298, 0.0
    %v1558 = vmax.f32 %v1500, 0.0
    %v1559 = vmax.f32 %v1300, 0.0
    %v1560 = vmax.f32 %v1302, 0.0
    %v1561 = vmax.f32 %v1503, 0.0
    %v1562 = vmax.f32 %v1306, 0.0
    %v1563 = vmax.f32 %v1308, 0.0
    %v1564 = vmax.f32 %v1508, 0.0
    %v1565 = vmax.f32 %v1310, 0.0
    %v1566 = vmax.f32 %v1312, 0.0
    %v1567 = vmax.f32 %v1511, 0.0
    %v1568 = vmax.f32 %v1316, 0.0
    %v1569 = vmax.f32 %v1318, 0.0
    %v1570 = vmax.f32 %v1516, 0.0
    %v1571 = vmax.f32 %v1320, 0.0
    %v1572 = vmax.f32 %v1322, 0.0
    %v1573 = vmax.f32 %v1519, 0.0
    %v1574 = vmax.f32 %v1326, 0.0
    %v1575 = vmax.f32 %v1328, 0.0
    %v1576 = vmax.f32 %v1524, 0.0
    %v1577 = vmax.f32 %v1330, 0.0
    %v1578 = vmax.f32 %v1332, 0.0
    %v1579 = vmax.f32 %v1527, 0.0
    %v1580 = vmax.f32 %v1336, 0.0
    %v1581 = vmax.f32 %v1338, 0.0
    %v1582 = vmax.f32 %v1532, 0.0
    %v1583 = vmax.f32 %v1340, 0.0
    %v1584 = vmax.f32 %v1342, 0.0
    %v1585 = vmax.f32 %v1535, 0.0
    %v1586 = vld [vmem:[%s5] sm:$0x7]
    %v1588 = vlaneseq
    %v1589 = vshrl.u32 %v1588, 7
    %v1590 = vsub.s32 0, %v1589
    %v1591 = vrot.slane %v1586, %v1590
    %v1592 = vlaneseq
    %v1593 = vshrl.u32 %v1592, 7
    %v1594 = vsub.s32 1, %v1593
    %v1595 = vrot.slane %v1586, %v1594
    %v1596 = vlaneseq
    %v1597 = vshrl.u32 %v1596, 7
    %v1598 = vsub.s32 2, %v1597
    %v1599 = vrot.slane %v1586, %v1598
    %v1603 = vmul.f32 %v1538, %v1591
    %v1604 = vmul.f32 %v1539, %v1595
    %v1605 = vmul.f32 %v1540, %v1599
    %v1606 = vmul.f32 %v1541, %v1591
    %v1607 = vmul.f32 %v1542, %v1595
    %v1608 = vmul.f32 %v1543, %v1599
    %v1609 = vmul.f32 %v1544, %v1591
    %v1610 = vmul.f32 %v1545, %v1595
    %v1611 = vmul.f32 %v1546, %v1599
    %v1612 = vmul.f32 %v1547, %v1591
    %v1613 = vmul.f32 %v1548, %v1595
    %v1614 = vmul.f32 %v1549, %v1599
    %v1615 = vmul.f32 %v1550, %v1591
    %v1616 = vmul.f32 %v1551, %v1595
    %v1617 = vmul.f32 %v1552, %v1599
    %v1618 = vmul.f32 %v1553, %v1591
    %v1619 = vmul.f32 %v1554, %v1595
    %v1620 = vmul.f32 %v1555, %v1599
    %v1621 = vmul.f32 %v1556, %v1591
    %v1622 = vmul.f32 %v1557, %v1595
    %v1623 = vmul.f32 %v1558, %v1599
    %v1624 = vmul.f32 %v1559, %v1591
    %v1625 = vmul.f32 %v1560, %v1595
    %v1626 = vmul.f32 %v1561, %v1599
    %v1627 = vmul.f32 %v1562, %v1591
    %v1628 = vmul.f32 %v1563, %v1595
    %v1629 = vmul.f32 %v1564, %v1599
    %v1630 = vmul.f32 %v1565, %v1591
    %v1631 = vmul.f32 %v1566, %v1595
    %v1632 = vmul.f32 %v1567, %v1599
    %v1633 = vmul.f32 %v1568, %v1591
    %v1634 = vmul.f32 %v1569, %v1595
    %v1635 = vmul.f32 %v1570, %v1599
    %v1636 = vmul.f32 %v1571, %v1591
    %v1637 = vmul.f32 %v1572, %v1595
    %v1638 = vmul.f32 %v1573, %v1599
    %v1639 = vmul.f32 %v1574, %v1591
    %v1640 = vmul.f32 %v1575, %v1595
    %v1641 = vmul.f32 %v1576, %v1599
    %v1642 = vmul.f32 %v1577, %v1591
    %v1643 = vmul.f32 %v1578, %v1595
    %v1644 = vmul.f32 %v1579, %v1599
    %v1645 = vmul.f32 %v1580, %v1591
    %v1646 = vmul.f32 %v1581, %v1595
    %v1647 = vmul.f32 %v1582, %v1599
    %v1648 = vmul.f32 %v1583, %v1591
    %v1649 = vmul.f32 %v1584, %v1595
    %v1650 = vmul.f32 %v1585, %v1599
    %v1651 = vadd.f32 %v1603, %v1604
    %v1652 = vadd.f32 %v1606, %v1607
    %v1653 = vadd.f32 %v1609, %v1610
    %v1654 = vadd.f32 %v1612, %v1613
    %v1655 = vadd.f32 %v1615, %v1616
    %v1656 = vadd.f32 %v1618, %v1619
    %v1657 = vadd.f32 %v1621, %v1622
    %v1658 = vadd.f32 %v1624, %v1625
    %v1659 = vadd.f32 %v1627, %v1628
    %v1660 = vadd.f32 %v1630, %v1631
    %v1661 = vadd.f32 %v1633, %v1634
    %v1662 = vadd.f32 %v1636, %v1637
    %v1663 = vadd.f32 %v1639, %v1640
    %v1664 = vadd.f32 %v1642, %v1643
    %v1665 = vadd.f32 %v1645, %v1646
    %v1666 = vadd.f32 %v1648, %v1649
    %v1667 = vadd.f32 %v1651, %v1605
    %v1668 = vadd.f32 %v1652, %v1608
    %v1669 = vadd.f32 %v1653, %v1611
    %v1670 = vadd.f32 %v1654, %v1614
    %v1671 = vadd.f32 %v1655, %v1617
    %v1672 = vadd.f32 %v1656, %v1620
    %v1673 = vadd.f32 %v1657, %v1623
    %v1674 = vadd.f32 %v1658, %v1626
    %v1675 = vadd.f32 %v1659, %v1629
    %v1676 = vadd.f32 %v1660, %v1632
    %v1677 = vadd.f32 %v1661, %v1635
    %v1678 = vadd.f32 %v1662, %v1638
    %v1679 = vadd.f32 %v1663, %v1641
    %v1680 = vadd.f32 %v1664, %v1644
    %v1681 = vadd.f32 %v1665, %v1647
    %v1682 = vadd.f32 %v1666, %v1650
    %1683 = vxpose.xlu0.b32.start [1/16] %v1667, 128
    %1684 = vxpose.xlu0.b32.cont [2/16] %v1668, 128
    %1685 = vxpose.xlu0.b32.cont [3/16] %v1669, 128
    %1686 = vxpose.xlu0.b32.cont [4/16] %v1670, 128
    %1687 = vxpose.xlu0.b32.cont [5/16] %v1671, 128
    %1688 = vxpose.xlu0.b32.cont [6/16] %v1672, 128
    %1689 = vxpose.xlu0.b32.cont [7/16] %v1673, 128
    %1690 = vxpose.xlu0.b32.cont [8/16] %v1674, 128
    %1691 = vxpose.xlu0.b32.cont [9/16] %v1675, 128
    %1692 = vxpose.xlu0.b32.cont [10/16] %v1676, 128
    %1693 = vxpose.xlu0.b32.cont [11/16] %v1677, 128
    %1694 = vxpose.xlu0.b32.cont [12/16] %v1678, 128
    %1695 = vxpose.xlu0.b32.cont [13/16] %v1679, 128
    %1696 = vxpose.xlu0.b32.cont [14/16] %v1680, 128
    %1697 = vxpose.xlu0.b32.cont [15/16] %v1681, 128
    %1698 = vxpose.xlu0.b32.end [16/16] %v1682, 128
    %v1699 = vpop.trf.xlu0
    %v1700 = vpop.trf.xlu0
    %v1701 = vpop.trf.xlu0
    %v1702 = vpop.trf.xlu0
    %v1703 = vpop.trf.xlu0
    %v1704 = vpop.trf.xlu0
    %v1705 = vpop.trf.xlu0
    %v1706 = vpop.trf.xlu0
    %v1707 = vpop.trf.xlu0
    %v1708 = vpop.trf.xlu0
    %v1709 = vpop.trf.xlu0
    %v1710 = vpop.trf.xlu0
    %v1711 = vpop.trf.xlu0
    %v1712 = vpop.trf.xlu0
    %v1713 = vpop.trf.xlu0
    %v1714 = vpop.trf.xlu0
    %v1715 = vadd.f32 %v1699, %v1700
    %v1716 = vadd.f32 %v1715, %v1701
    %v1717 = vadd.f32 %v1716, %v1702
    %v1718 = vadd.f32 %v1717, %v1703
    %v1719 = vadd.f32 %v1718, %v1704
    %v1720 = vadd.f32 %v1719, %v1705
    %v1721 = vadd.f32 %v1720, %v1706
    %v1722 = vadd.f32 %v1721, %v1707
    %v1723 = vadd.f32 %v1722, %v1708
    %v1724 = vadd.f32 %v1723, %v1709
    %v1725 = vadd.f32 %v1724, %v1710
    %v1726 = vadd.f32 %v1725, %v1711
    %v1727 = vadd.f32 %v1726, %v1712
    %v1728 = vadd.f32 %v1727, %v1713
    %v1729 = vadd.f32 %v1728, %v1714
    %v1730 = vrot.slane %v1729, 4
    %v1731 = vadd.f32 %v1729, %v1730
    %v1732 = vrot.slane %v1731, 2
    %v1733 = vadd.f32 %v1731, %v1732
    %v1734 = vrot.slane %v1733, 1
    %v1735 = vadd.f32 %v1733, %v1734
    %s1736 = sld [smem:[#allocation2]]
    %v1737 = vstv %s1736
    %v1738 = vadd.f32 %v1735, %v1737
    %1739 = vst [vmem:[#allocation6] sm:$0x1] %v1738
    // Predicated region
    $region34: #{tpu_custom_call.1} parent=1 // pred_check
      _
    $region35: #{tpu_custom_call.1} parent=1 // pred_check_branch
      %1741 = sbr.rel (0) target = $region37
    $region36: #{tpu_custom_call.1} parent=1 // pred_region
      %s1743 = ssub.s32 16, 16
      %1744 = vsyncadd [#allocation5], %s1743
      %s1746 = sshll.u32 [#allocation6], 4
      %s1747 = int_to_ptr.vmem [resolvable:$true] %s1746
      %1749 = dma.vmem_to_hbm [thread:$0]  %s1747, 16, %s7, [#allocation5]
    $region37: #{tpu_custom_call.1} parent=1 // pred_fallthru
      _
    // Predicated region
    $region38: #{tpu_custom_call.1} parent=1 // pred_check
      _
    $region39: #{tpu_custom_call.1} parent=1 // pred_check_branch
      %1751 = sbr.rel (0) target = $region41
    $region40: #{tpu_custom_call.1} parent=1 // pred_region
      %1752 = dma.done [#allocation5], 16
    $region41: #{tpu_custom_call.1} parent=1 // pred_fallthru
      _
    %1753 = vsyncpa [#allocation4], 1
    %1754 = vsyncpa [#allocation5], 1

</llo_original>
